<compile_context>
chip_gen: v5e
topology: v5e:2x2
jax: 0.10.0
libtpu: 0.0.40
codegen_flags: <defaults>
</compile_context>

<pallas_src>
import functools

import jax
import jax.numpy as jnp
from jax import lax
from jax.experimental import pallas as pl
from jax.experimental.pallas import tpu as pltpu


def _round_up(x, m):
    return ((x + m - 1) // m) * m


def _rnn_kernel(*refs, alpha, chunk, has_ncon, mm_dtype):
    """One grid step processes `chunk` timesteps.

    refs (has_ncon=True):
      x0, r0            : (1, Hp)      initial x = arctanh(r0) and r rows
      inp               : (chunk, Hp)  precomputed alpha*(W_in@u[t] + noise_in[t])
      ncon              : (chunk, Hp)  noise_con rows            [optional]
      w_rec_t           : (Hp, Hp)     W_rec^T   (VMEM-resident across chunks)
      w_out_t           : (Hp, Op)     W_out^T   (VMEM-resident across chunks)
      hidden (out)      : (chunk, Hp)  r at global steps base+1 .. base+chunk
      o      (out)      : (chunk, Op)
      x_scr, r_scr      : (1, Hp)      recurrent state carried across grid steps
    """
    if has_ncon:
        (x0_ref, r0_ref, inp_ref, ncon_ref,
         w_rec_t_ref, w_out_t_ref, hidden_ref, o_ref, x_scr, r_scr) = refs
    else:
        (x0_ref, r0_ref, inp_ref,
         w_rec_t_ref, w_out_t_ref, hidden_ref, o_ref, x_scr, r_scr) = refs
        ncon_ref = None

    @pl.when(pl.program_id(0) == 0)
    def _init():
        x_scr[...] = x0_ref[...]
        r_scr[...] = r0_ref[...]

    one_minus_alpha = 1.0 - alpha
    n_sub = chunk // 8

    def outer(i, carry):
        x, r = carry                                   # (1, Hp) f32, kept in vregs
        base = pl.multiple_of(i * 8, 8)
        # One (8, Hp) tile load per 8 timesteps (instead of 8/16 row loads).
        inp_tile = inp_ref[pl.ds(base, 8), :]
        ncon_tile = ncon_ref[pl.ds(base, 8), :] if has_ncon else None
        for j in range(8):                             # static 8x unroll
            # TODO(synk): hold W_rec^T resident in the MXU staging registers via
            # pltpu.matmul_push_rhs / matmul_acc_lhs / matmul_pop to avoid
            # re-streaming the RHS every timestep (MRF on v5e/v6e vs MRB on v7x).
            rec = jnp.dot(r.astype(mm_dtype), w_rec_t_ref[...],
                          preferred_element_type=jnp.float32)
            x = one_minus_alpha * x + alpha * rec + inp_tile[j:j + 1, :]
            r = jnp.tanh(x)
            if has_ncon:
                r = r + ncon_tile[j:j + 1, :]
            # Direct row store; stores are free filler under the matvec->tanh chain.
            hidden_ref[pl.ds(base + j, 1), :] = r
        return (x, r)

    x_f, r_f = lax.fori_loop(0, n_sub, outer, (x_scr[...], r_scr[...]))
    x_scr[...] = x_f
    r_scr[...] = r_f

    # Deferred readout: one (chunk, Hp) x (Hp, Op) MXU matmul per chunk.
    o_ref[...] = jnp.dot(hidden_ref[...].astype(mm_dtype), w_out_t_ref[...],
                         preferred_element_type=jnp.float32)


def rnn_forward(u, r0, w_in, w_rec, w_out, noise_in_arr, noise_con_arr=None,
                alpha=0.1, chunk=1024, matmul_dtype=jnp.bfloat16):
    """u:(T,I), r0:(H,), w_in:(H,I), w_rec:(H,H), w_out:(O,H),
    noise_in_arr:(T,H), noise_con_arr:(T,H) or None
    -> (hidden_states:(T+1,H), o:(T,O))"""
    f32 = jnp.float32
    mm_dtype = jnp.dtype(matmul_dtype)
    u = jnp.asarray(u, f32)
    r0 = jnp.asarray(r0, f32)
    w_in = jnp.asarray(w_in, f32)
    w_rec = jnp.asarray(w_rec, f32)
    w_out = jnp.asarray(w_out, f32)
    noise_in_arr = jnp.asarray(noise_in_arr, f32)
    has_ncon = noise_con_arr is not None
    if has_ncon:
        noise_con_arr = jnp.asarray(noise_con_arr, f32)

    T, _ = u.shape
    H = r0.shape[0]
    O = w_out.shape[0]

    # Padded / aligned sizes.
    Hp = _round_up(H, 128)
    Op = _round_up(O, 128)
    Tc = _round_up(T, 8)

    # VMEM budget guard (sized for v7x's 64 MiB; v5e/v6e have 2x headroom):
    # double-buffered streams + resident weights must stay under ~48 MiB.
    stream_bytes_per_row = 4 * ((2 if has_ncon else 1) * Hp + Hp + Op)
    weight_bytes = mm_dtype.itemsize * (Hp * Hp + Hp * Op)
    budget = 48 * 1024 * 1024 - 2 * weight_bytes - 4 * 4 * Hp
    chunk_cap = max(8, (budget // (2 * stream_bytes_per_row)) // 8 * 8)
    chunk = max(8, min(_round_up(chunk, 8), Tc, chunk_cap))
    T_pad = _round_up(T, chunk)
    n_chunks = T_pad // chunk

    # Hoisted input projection with alpha folded in: one batched matmul outside
    # the sequential recurrence.
    inp_all = alpha * (u @ w_in.T + noise_in_arr)                    # (T, H)

    # Zero-pad to lane/sublane-aligned shapes. Padded columns stay exactly zero
    # through the recurrence (tanh(0)=0, zero weights/noise) -> no numeric change.
    inp_p = jnp.zeros((T_pad, Hp), f32).at[:T, :H].set(inp_all)
    r0_p = jnp.zeros((1, Hp), f32).at[0, :H].set(r0)
    x0_p = jnp.zeros((1, Hp), f32).at[0, :H].set(jnp.arctanh(r0))
    w_rec_t_p = jnp.zeros((Hp, Hp), f32).at[:H, :H].set(w_rec.T).astype(mm_dtype)
    w_out_t_p = jnp.zeros((Hp, Op), f32).at[:H, :O].set(w_out.T).astype(mm_dtype)

    inputs = [x0_p, r0_p, inp_p]
    in_specs = [
        pl.BlockSpec((1, Hp), lambda i: (0, 0)),          # x0
        pl.BlockSpec((1, Hp), lambda i: (0, 0)),          # r0
        pl.BlockSpec((chunk, Hp), lambda i: (i, 0)),      # inp rows (streamed)
    ]
    if has_ncon:
        ncon_p = jnp.zeros((T_pad, Hp), f32).at[:T, :H].set(noise_con_arr)
        inputs.append(ncon_p)
        in_specs.append(pl.BlockSpec((chunk, Hp), lambda i: (i, 0)))
    inputs += [w_rec_t_p, w_out_t_p]
    in_specs += [
        pl.BlockSpec((Hp, Hp), lambda i: (0, 0)),         # W_rec^T (resident)
        pl.BlockSpec((Hp, Op), lambda i: (0, 0)),         # W_out^T (resident)
    ]

    kernel = functools.partial(_rnn_kernel, alpha=float(alpha), chunk=chunk,
                               has_ncon=has_ncon, mm_dtype=mm_dtype)

    flops = int(2 * T_pad * Hp * Hp + 2 * T_pad * Hp * Op)
    bytes_accessed = int(4 * T_pad * Hp * (2 if has_ncon else 1)   # streamed in
                         + 4 * (T_pad * Hp + T_pad * Op)           # hidden + o out
                         + weight_bytes + 4 * 2 * Hp)              # weights + x0/r0

    hidden_p, o_p = pl.pallas_call(
        kernel,
        out_shape=(
            jax.ShapeDtypeStruct((T_pad, Hp), f32),   # hidden rows 1..T (padded)
            jax.ShapeDtypeStruct((T_pad, Op), f32),   # o (padded)
        ),
        grid_spec=pltpu.PrefetchScalarGridSpec(
            num_scalar_prefetch=0,
            grid=(n_chunks,),
            in_specs=in_specs,
            out_specs=(
                pl.BlockSpec((chunk, Hp), lambda i: (i, 0)),    # hidden
                pl.BlockSpec((chunk, Op), lambda i: (i, 0)),    # o
            ),
            scratch_shapes=[
                pltpu.VMEM((1, Hp), f32),   # x state (carried across chunks)
                pltpu.VMEM((1, Hp), f32),   # r state (carried across chunks)
            ],
        ),
        compiler_params=pltpu.CompilerParams(
            dimension_semantics=("arbitrary",)),
        cost_estimate=pl.CostEstimate(
            flops=flops,
            transcendentals=int(T_pad * Hp),
            bytes_accessed=bytes_accessed),
    )(*inputs)

    hidden_states = jnp.concatenate([r0[None, :], hidden_p[:T, :H]], axis=0)
    o = o_p[:T, :O]
    return hidden_states, o


def _xavier_uniform(key, shape):
    fan_out, fan_in = shape
    bound = jnp.sqrt(6.0 / (fan_in + fan_out))
    return jax.random.uniform(key, shape, jnp.float32, -bound, bound)


def _reference_forward(u, r0, w_in, w_rec, w_out, noise_in_arr, noise_con_arr,
                       alpha=0.1):
    """Pure-JAX f32 reference mirroring the PyTorch loop."""
    T = u.shape[0]
    x = jnp.arctanh(r0)
    r = r0
    hidden = [r0]
    outs = []
    for t in range(T):
        x = (1 - alpha) * x + alpha * (w_rec @ r + w_in @ u[t] + noise_in_arr[t])
        r = jnp.tanh(x) + noise_con_arr[t]
        hidden.append(r)
        outs.append(w_out @ r)
    return jnp.stack(hidden), jnp.stack(outs)


def _matched_reference(u, r0, w_in, w_rec, w_out, noise_in_arr, noise_con_arr,
                       alpha, mm_dtype):
    """Reference using the same matmul-operand precision as the kernel."""
    T = u.shape[0]
    inp_all = alpha * (u @ w_in.T + noise_in_arr)
    w_rec_t = w_rec.T.astype(mm_dtype)
    w_out_t = w_out.T.astype(mm_dtype)
    x = jnp.arctanh(r0)
    r = r0
    hidden = [r0]
    outs = []
    for t in range(T):
        rec = jnp.dot(r.astype(mm_dtype), w_rec_t,
                      preferred_element_type=jnp.float32)
        x = (1 - alpha) * x + alpha * rec + inp_all[t]
        r = jnp.tanh(x)
        if noise_con_arr is not None:
            r = r + noise_con_arr[t]
        hidden.append(r)
        outs.append(jnp.dot(r.astype(mm_dtype), w_out_t,
                            preferred_element_type=jnp.float32))
    return jnp.stack(hidden), jnp.stack(outs)


if __name__ == "__main__":
    key = jax.random.PRNGKey(0)
    k_u, k_r, k_in, k_rec, k_out, k_nin, k_ncon = jax.random.split(key, 7)

    # Small shapes consistent with the module's forward semantics.
    T = 20            # seq_len (exercises T-padding + multi-chunk grid)
    input_dims = 4
    hidden_dims = 32
    output_dims = 2
    alpha = 0.1
    noise_in = 0.1

    # Deterministic parameter init (Xavier uniform, zeroed recurrent diagonal).
    W_in = _xavier_uniform(k_in, (hidden_dims, input_dims))
    W_rec = _xavier_uniform(k_rec, (hidden_dims, hidden_dims))
    W_rec = W_rec * (1.0 - jnp.eye(hidden_dims, dtype=jnp.float32))
    W_out = _xavier_uniform(k_out, (output_dims, hidden_dims))

    # Inputs: u (T, input_dims), initial rates in (-1, 1) so arctanh is finite.
    u = jax.random.normal(k_u, (T, input_dims), jnp.float32)
    r0 = 0.5 * jnp.tanh(jax.random.normal(k_r, (hidden_dims,), jnp.float32))

    # torch.normal(zeros, scale) noise draws, pre-sampled deterministically.
    noise_in_arr = noise_in * jax.random.normal(k_nin, (T, hidden_dims), jnp.float32)
    noise_con_arr = 0.05 * jax.random.normal(k_ncon, (T, hidden_dims), jnp.float32)
    zeros_con = jnp.zeros((T, hidden_dims), jnp.float32)

    # --- Test 1: f32 matmuls, small chunk (multi-chunk grid), noise_con path. ---
    hid32, o32 = rnn_forward(u, r0, W_in, W_rec, W_out,
                             noise_in_arr, noise_con_arr,
                             alpha=alpha, chunk=8, matmul_dtype=jnp.float32)
    jax.block_until_ready((hid32, o32))
    hid_ref, out_ref = _reference_forward(u, r0, W_in, W_rec, W_out,
                                          noise_in_arr, noise_con_arr, alpha=alpha)
    assert hid32.shape == (T + 1, hidden_dims)
    assert o32.shape == (T, output_dims)
    assert jnp.allclose(hid32, hid_ref, atol=1e-4, rtol=1e-4)
    assert jnp.allclose(o32, out_ref, atol=1e-4, rtol=1e-4)

    # --- Test 2: default bf16 matmuls, default chunk, noise_con stream dropped. ---
    hid_bf, o_bf = rnn_forward(u, r0, W_in, W_rec, W_out,
                               noise_in_arr, None, alpha=alpha)
    jax.block_until_ready((hid_bf, o_bf))
    # Tight check vs matched-precision reference (same matmul dtypes).
    hid_m, o_m = _matched_reference(u, r0, W_in, W_rec, W_out,
                                    noise_in_arr, None, alpha, jnp.bfloat16)
    assert jnp.allclose(hid_bf, hid_m, atol=1e-3, rtol=1e-3)
    assert jnp.allclose(o_bf, o_m, atol=1e-3, rtol=1e-3)
    # Loose sanity check vs full-f32 reference (bf16 operand drift over T steps).
    hid_ref0, out_ref0 = _reference_forward(u, r0, W_in, W_rec, W_out,
                                            noise_in_arr, zeros_con, alpha=alpha)
    assert jnp.allclose(hid_bf, hid_ref0, atol=2e-2, rtol=2e-2)
    assert jnp.allclose(o_bf, out_ref0, atol=2e-2, rtol=2e-2)

    print("KERNEL_OK")
</pallas_src>

<mosaic_0001>
module attributes {stable_mosaic.version = 11 : i64} {
  func.func @_rnn_kernel(%arg0: i32, %arg1: memref<1x128xf32, #tpu.memory_space<vmem>>, %arg2: memref<1x128xf32, #tpu.memory_space<vmem>>, %arg3: memref<8x128xf32, #tpu.memory_space<vmem>>, %arg4: memref<8x128xf32, #tpu.memory_space<vmem>>, %arg5: memref<128x128xf32, #tpu.memory_space<vmem>>, %arg6: memref<128x128xf32, #tpu.memory_space<vmem>>, %arg7: memref<8x128xf32, #tpu.memory_space<vmem>>, %arg8: memref<8x128xf32, #tpu.memory_space<vmem>>, %arg9: memref<1x128xf32, #tpu.memory_space<vmem>>, %arg10: memref<1x128xf32, #tpu.memory_space<vmem>>) attributes {dimension_semantics = [#tpu.dimension_semantics<arbitrary>], iteration_bounds = array<i64: 3>, scalar_prefetch = 0 : i64, scratch_operands = 2 : i64, tpu.core_type = #tpu.core_type<tc>, window_params = [{pipeline_mode = #tpu.pipeline_mode<synchronous>, transform_indices = @transform_0, window_bounds = array<i64: 1, 128>}, {pipeline_mode = #tpu.pipeline_mode<synchronous>, transform_indices = @transform_1, window_bounds = array<i64: 1, 128>}, {transform_indices = @transform_2, window_bounds = array<i64: 8, 128>}, {transform_indices = @transform_3, window_bounds = array<i64: 8, 128>}, {pipeline_mode = #tpu.pipeline_mode<synchronous>, transform_indices = @transform_4, window_bounds = array<i64: 128, 128>}, {pipeline_mode = #tpu.pipeline_mode<synchronous>, transform_indices = @transform_5, window_bounds = array<i64: 128, 128>}, {transform_indices = @transform_6, window_bounds = array<i64: 8, 128>}, {transform_indices = @transform_7, window_bounds = array<i64: 8, 128>}]} {
    %c0_i32 = arith.constant 0 : i32
    %0 = arith.cmpi eq, %arg0, %c0_i32 : i32
    %1 = arith.extui %0 : i1 to i32
    %c0_i32_0 = arith.constant 0 : i32
    %2 = arith.cmpi ne, %1, %c0_i32_0 : i32
    scf.if %2 {
      %c0_67 = arith.constant 0 : index
      %c0_68 = arith.constant 0 : index
      %137 = vector.load %arg1[%c0_67, %c0_68] : memref<1x128xf32, #tpu.memory_space<vmem>>, vector<1x128xf32>
      %c0_69 = arith.constant 0 : index
      %c0_70 = arith.constant 0 : index
      %138 = vector.load %arg9[%c0_69, %c0_70] : memref<1x128xf32, #tpu.memory_space<vmem>>, vector<1x128xf32>
      tpu.vector_store %arg9[%c0_69, %c0_70], %137 {strides = array<i32>} : memref<1x128xf32, #tpu.memory_space<vmem>>, vector<1x128xf32>,
      %c0_71 = arith.constant 0 : index
      %c0_72 = arith.constant 0 : index
      %139 = vector.load %arg2[%c0_71, %c0_72] : memref<1x128xf32, #tpu.memory_space<vmem>>, vector<1x128xf32>
      %c0_73 = arith.constant 0 : index
      %c0_74 = arith.constant 0 : index
      %140 = vector.load %arg10[%c0_73, %c0_74] : memref<1x128xf32, #tpu.memory_space<vmem>>, vector<1x128xf32>
      tpu.vector_store %arg10[%c0_73, %c0_74], %139 {strides = array<i32>} : memref<1x128xf32, #tpu.memory_space<vmem>>, vector<1x128xf32>,
    } else {
    }
    %c0 = arith.constant 0 : index
    %c0_1 = arith.constant 0 : index
    %3 = vector.load %arg9[%c0, %c0_1] : memref<1x128xf32, #tpu.memory_space<vmem>>, vector<1x128xf32>
    %c0_2 = arith.constant 0 : index
    %c0_3 = arith.constant 0 : index
    %4 = vector.load %arg10[%c0_2, %c0_3] : memref<1x128xf32, #tpu.memory_space<vmem>>, vector<1x128xf32>
    %c0_i32_4 = arith.constant 0 : i32
    %c8_i32 = arith.constant 8 : i32
    %5 = arith.muli %c0_i32_4, %c8_i32 : i32
    %6 = tpu.assume_multiple %5, 8 : i32
    %7 = arith.index_cast %6 : i32 to index
    %c0_5 = arith.constant 0 : index
    %8 = vector.load %arg3[%7, %c0_5] : memref<8x128xf32, #tpu.memory_space<vmem>>, vector<8x128xf32>
    %9 = arith.index_cast %6 : i32 to index
    %c0_6 = arith.constant 0 : index
    %10 = vector.load %arg4[%9, %c0_6] : memref<8x128xf32, #tpu.memory_space<vmem>>, vector<8x128xf32>
    %c0_7 = arith.constant 0 : index
    %c0_8 = arith.constant 0 : index
    %11 = vector.load %arg5[%c0_7, %c0_8] : memref<128x128xf32, #tpu.memory_space<vmem>>, vector<128x128xf32>
    %cst = arith.constant dense<0.000000e+00> : vector<1x128xf32>
    %12 = tpu.matmul %4, %11, %cst {dimension_numbers = #tpu.dot_dimension_numbers<[1], [0], [0], [1], [0, 0, 1, 1], [], []>} : vector<1x128xf32>, vector<128x128xf32>, vector<1x128xf32> -> vector<1x128xf32>
    %cst_9 = arith.constant 0.899999976 : f32
    %13 = vector.broadcast %cst_9 : f32 to vector<1x128xf32>
    %14 = arith.mulf %13, %3 : vector<1x128xf32>
    %cst_10 = arith.constant 1.000000e-01 : f32
    %15 = vector.broadcast %cst_10 : f32 to vector<1x128xf32>
    %16 = arith.mulf %15, %12 : vector<1x128xf32>
    %17 = arith.addf %14, %16 : vector<1x128xf32>
    %18 = vector.extract_strided_slice %8 {offsets = [0, 0], sizes = [1, 128], strides = [1, 1]} : vector<8x128xf32> to vector<1x128xf32>
    %19 = arith.addf %17, %18 : vector<1x128xf32>
    %20 = math.tanh %19 : vector<1x128xf32>
    %21 = vector.extract_strided_slice %10 {offsets = [0, 0], sizes = [1, 128], strides = [1, 1]} : vector<8x128xf32> to vector<1x128xf32>
    %22 = arith.addf %20, %21 : vector<1x128xf32>
    %c0_i32_11 = arith.constant 0 : i32
    %23 = arith.addi %6, %c0_i32_11 : i32
    %24 = arith.index_cast %23 : i32 to index
    %c0_12 = arith.constant 0 : index
    %25 = vector.load %arg7[%24, %c0_12] : memref<8x128xf32, #tpu.memory_space<vmem>>, vector<1x128xf32>
    tpu.vector_store %arg7[%24, %c0_12], %22 {strides = array<i32>} : memref<8x128xf32, #tpu.memory_space<vmem>>, vector<1x128xf32>,
    %c0_13 = arith.constant 0 : index
    %c0_14 = arith.constant 0 : index
    %26 = vector.load %arg5[%c0_13, %c0_14] : memref<128x128xf32, #tpu.memory_space<vmem>>, vector<128x128xf32>
    %cst_15 = arith.constant dense<0.000000e+00> : vector<1x128xf32>
    %27 = tpu.matmul %22, %26, %cst_15 {dimension_numbers = #tpu.dot_dimension_numbers<[1], [0], [0], [1], [0, 0, 1, 1], [], []>} : vector<1x128xf32>, vector<128x128xf32>, vector<1x128xf32> -> vector<1x128xf32>
    %cst_16 = arith.constant 0.899999976 : f32
    %28 = vector.broadcast %cst_16 : f32 to vector<1x128xf32>
    %29 = arith.mulf %28, %19 : vector<1x128xf32>
    %cst_17 = arith.constant 1.000000e-01 : f32
    %30 = vector.broadcast %cst_17 : f32 to vector<1x128xf32>
    %31 = arith.mulf %30, %27 : vector<1x128xf32>
    %32 = arith.addf %29, %31 : vector<1x128xf32>
    %33 = vector.extract_strided_slice %8 {offsets = [1, 0], sizes = [1, 128], strides = [1, 1]} : vector<8x128xf32> to vector<1x128xf32>
    %34 = arith.addf %32, %33 : vector<1x128xf32>
    %35 = math.tanh %34 : vector<1x128xf32>
    %36 = vector.extract_strided_slice %10 {offsets = [1, 0], sizes = [1, 128], strides = [1, 1]} : vector<8x128xf32> to vector<1x128xf32>
    %37 = arith.addf %35, %36 : vector<1x128xf32>
    %c1_i32 = arith.constant 1 : i32
    %38 = arith.addi %6, %c1_i32 : i32
    %39 = arith.index_cast %38 : i32 to index
    %c0_18 = arith.constant 0 : index
    %40 = vector.load %arg7[%39, %c0_18] : memref<8x128xf32, #tpu.memory_space<vmem>>, vector<1x128xf32>
    tpu.vector_store %arg7[%39, %c0_18], %37 {strides = array<i32>} : memref<8x128xf32, #tpu.memory_space<vmem>>, vector<1x128xf32>,
    %c0_19 = arith.constant 0 : index
    %c0_20 = arith.constant 0 : index
    %41 = vector.load %arg5[%c0_19, %c0_20] : memref<128x128xf32, #tpu.memory_space<vmem>>, vector<128x128xf32>
    %cst_21 = arith.constant dense<0.000000e+00> : vector<1x128xf32>
    %42 = tpu.matmul %37, %41, %cst_21 {dimension_numbers = #tpu.dot_dimension_numbers<[1], [0], [0], [1], [0, 0, 1, 1], [], []>} : vector<1x128xf32>, vector<128x128xf32>, vector<1x128xf32> -> vector<1x128xf32>
    %cst_22 = arith.constant 0.899999976 : f32
    %43 = vector.broadcast %cst_22 : f32 to vector<1x128xf32>
    %44 = arith.mulf %43, %34 : vector<1x128xf32>
    %cst_23 = arith.constant 1.000000e-01 : f32
    %45 = vector.broadcast %cst_23 : f32 to vector<1x128xf32>
    %46 = arith.mulf %45, %42 : vector<1x128xf32>
    %47 = arith.addf %44, %46 : vector<1x128xf32>
    %48 = vector.extract_strided_slice %8 {offsets = [2, 0], sizes = [1, 128], strides = [1, 1]} : vector<8x128xf32> to vector<1x128xf32>
    %49 = arith.addf %47, %48 : vector<1x128xf32>
    %50 = math.tanh %49 : vector<1x128xf32>
    %51 = vector.extract_strided_slice %10 {offsets = [2, 0], sizes = [1, 128], strides = [1, 1]} : vector<8x128xf32> to vector<1x128xf32>
    %52 = arith.addf %50, %51 : vector<1x128xf32>
    %c2_i32 = arith.constant 2 : i32
    %53 = arith.addi %6, %c2_i32 : i32
    %54 = arith.index_cast %53 : i32 to index
    %c0_24 = arith.constant 0 : index
    %55 = vector.load %arg7[%54, %c0_24] : memref<8x128xf32, #tpu.memory_space<vmem>>, vector<1x128xf32>
    tpu.vector_store %arg7[%54, %c0_24], %52 {strides = array<i32>} : memref<8x128xf32, #tpu.memory_space<vmem>>, vector<1x128xf32>,
    %c0_25 = arith.constant 0 : index
    %c0_26 = arith.constant 0 : index
    %56 = vector.load %arg5[%c0_25, %c0_26] : memref<128x128xf32, #tpu.memory_space<vmem>>, vector<128x128xf32>
    %cst_27 = arith.constant dense<0.000000e+00> : vector<1x128xf32>
    %57 = tpu.matmul %52, %56, %cst_27 {dimension_numbers = #tpu.dot_dimension_numbers<[1], [0], [0], [1], [0, 0, 1, 1], [], []>} : vector<1x128xf32>, vector<128x128xf32>, vector<1x128xf32> -> vector<1x128xf32>
    %cst_28 = arith.constant 0.899999976 : f32
    %58 = vector.broadcast %cst_28 : f32 to vector<1x128xf32>
    %59 = arith.mulf %58, %49 : vector<1x128xf32>
    %cst_29 = arith.constant 1.000000e-01 : f32
    %60 = vector.broadcast %cst_29 : f32 to vector<1x128xf32>
    %61 = arith.mulf %60, %57 : vector<1x128xf32>
    %62 = arith.addf %59, %61 : vector<1x128xf32>
    %63 = vector.extract_strided_slice %8 {offsets = [3, 0], sizes = [1, 128], strides = [1, 1]} : vector<8x128xf32> to vector<1x128xf32>
    %64 = arith.addf %62, %63 : vector<1x128xf32>
    %65 = math.tanh %64 : vector<1x128xf32>
    %66 = vector.extract_strided_slice %10 {offsets = [3, 0], sizes = [1, 128], strides = [1, 1]} : vector<8x128xf32> to vector<1x128xf32>
    %67 = arith.addf %65, %66 : vector<1x128xf32>
    %c3_i32 = arith.constant 3 : i32
    %68 = arith.addi %6, %c3_i32 : i32
    %69 = arith.index_cast %68 : i32 to index
    %c0_30 = arith.constant 0 : index
    %70 = vector.load %arg7[%69, %c0_30] : memref<8x128xf32, #tpu.memory_space<vmem>>, vector<1x128xf32>
    tpu.vector_store %arg7[%69, %c0_30], %67 {strides = array<i32>} : memref<8x128xf32, #tpu.memory_space<vmem>>, vector<1x128xf32>,
    %c0_31 = arith.constant 0 : index
    %c0_32 = arith.constant 0 : index
    %71 = vector.load %arg5[%c0_31, %c0_32] : memref<128x128xf32, #tpu.memory_space<vmem>>, vector<128x128xf32>
    %cst_33 = arith.constant dense<0.000000e+00> : vector<1x128xf32>
    %72 = tpu.matmul %67, %71, %cst_33 {dimension_numbers = #tpu.dot_dimension_numbers<[1], [0], [0], [1], [0, 0, 1, 1], [], []>} : vector<1x128xf32>, vector<128x128xf32>, vector<1x128xf32> -> vector<1x128xf32>
    %cst_34 = arith.constant 0.899999976 : f32
    %73 = vector.broadcast %cst_34 : f32 to vector<1x128xf32>
    %74 = arith.mulf %73, %64 : vector<1x128xf32>
    %cst_35 = arith.constant 1.000000e-01 : f32
    %75 = vector.broadcast %cst_35 : f32 to vector<1x128xf32>
    %76 = arith.mulf %75, %72 : vector<1x128xf32>
    %77 = arith.addf %74, %76 : vector<1x128xf32>
    %78 = vector.extract_strided_slice %8 {offsets = [4, 0], sizes = [1, 128], strides = [1, 1]} : vector<8x128xf32> to vector<1x128xf32>
    %79 = arith.addf %77, %78 : vector<1x128xf32>
    %80 = math.tanh %79 : vector<1x128xf32>
    %81 = vector.extract_strided_slice %10 {offsets = [4, 0], sizes = [1, 128], strides = [1, 1]} : vector<8x128xf32> to vector<1x128xf32>
    %82 = arith.addf %80, %81 : vector<1x128xf32>
    %c4_i32 = arith.constant 4 : i32
    %83 = arith.addi %6, %c4_i32 : i32
    %84 = arith.index_cast %83 : i32 to index
    %c0_36 = arith.constant 0 : index
    %85 = vector.load %arg7[%84, %c0_36] : memref<8x128xf32, #tpu.memory_space<vmem>>, vector<1x128xf32>
    tpu.vector_store %arg7[%84, %c0_36], %82 {strides = array<i32>} : memref<8x128xf32, #tpu.memory_space<vmem>>, vector<1x128xf32>,
    %c0_37 = arith.constant 0 : index
    %c0_38 = arith.constant 0 : index
    %86 = vector.load %arg5[%c0_37, %c0_38] : memref<128x128xf32, #tpu.memory_space<vmem>>, vector<128x128xf32>
    %cst_39 = arith.constant dense<0.000000e+00> : vector<1x128xf32>
    %87 = tpu.matmul %82, %86, %cst_39 {dimension_numbers = #tpu.dot_dimension_numbers<[1], [0], [0], [1], [0, 0, 1, 1], [], []>} : vector<1x128xf32>, vector<128x128xf32>, vector<1x128xf32> -> vector<1x128xf32>
    %cst_40 = arith.constant 0.899999976 : f32
    %88 = vector.broadcast %cst_40 : f32 to vector<1x128xf32>
    %89 = arith.mulf %88, %79 : vector<1x128xf32>
    %cst_41 = arith.constant 1.000000e-01 : f32
    %90 = vector.broadcast %cst_41 : f32 to vector<1x128xf32>
    %91 = arith.mulf %90, %87 : vector<1x128xf32>
    %92 = arith.addf %89, %91 : vector<1x128xf32>
    %93 = vector.extract_strided_slice %8 {offsets = [5, 0], sizes = [1, 128], strides = [1, 1]} : vector<8x128xf32> to vector<1x128xf32>
    %94 = arith.addf %92, %93 : vector<1x128xf32>
    %95 = math.tanh %94 : vector<1x128xf32>
    %96 = vector.extract_strided_slice %10 {offsets = [5, 0], sizes = [1, 128], strides = [1, 1]} : vector<8x128xf32> to vector<1x128xf32>
    %97 = arith.addf %95, %96 : vector<1x128xf32>
    %c5_i32 = arith.constant 5 : i32
    %98 = arith.addi %6, %c5_i32 : i32
    %99 = arith.index_cast %98 : i32 to index
    %c0_42 = arith.constant 0 : index
    %100 = vector.load %arg7[%99, %c0_42] : memref<8x128xf32, #tpu.memory_space<vmem>>, vector<1x128xf32>
    tpu.vector_store %arg7[%99, %c0_42], %97 {strides = array<i32>} : memref<8x128xf32, #tpu.memory_space<vmem>>, vector<1x128xf32>,
    %c0_43 = arith.constant 0 : index
    %c0_44 = arith.constant 0 : index
    %101 = vector.load %arg5[%c0_43, %c0_44] : memref<128x128xf32, #tpu.memory_space<vmem>>, vector<128x128xf32>
    %cst_45 = arith.constant dense<0.000000e+00> : vector<1x128xf32>
    %102 = tpu.matmul %97, %101, %cst_45 {dimension_numbers = #tpu.dot_dimension_numbers<[1], [0], [0], [1], [0, 0, 1, 1], [], []>} : vector<1x128xf32>, vector<128x128xf32>, vector<1x128xf32> -> vector<1x128xf32>
    %cst_46 = arith.constant 0.899999976 : f32
    %103 = vector.broadcast %cst_46 : f32 to vector<1x128xf32>
    %104 = arith.mulf %103, %94 : vector<1x128xf32>
    %cst_47 = arith.constant 1.000000e-01 : f32
    %105 = vector.broadcast %cst_47 : f32 to vector<1x128xf32>
    %106 = arith.mulf %105, %102 : vector<1x128xf32>
    %107 = arith.addf %104, %106 : vector<1x128xf32>
    %108 = vector.extract_strided_slice %8 {offsets = [6, 0], sizes = [1, 128], strides = [1, 1]} : vector<8x128xf32> to vector<1x128xf32>
    %109 = arith.addf %107, %108 : vector<1x128xf32>
    %110 = math.tanh %109 : vector<1x128xf32>
    %111 = vector.extract_strided_slice %10 {offsets = [6, 0], sizes = [1, 128], strides = [1, 1]} : vector<8x128xf32> to vector<1x128xf32>
    %112 = arith.addf %110, %111 : vector<1x128xf32>
    %c6_i32 = arith.constant 6 : i32
    %113 = arith.addi %6, %c6_i32 : i32
    %114 = arith.index_cast %113 : i32 to index
    %c0_48 = arith.constant 0 : index
    %115 = vector.load %arg7[%114, %c0_48] : memref<8x128xf32, #tpu.memory_space<vmem>>, vector<1x128xf32>
    tpu.vector_store %arg7[%114, %c0_48], %112 {strides = array<i32>} : memref<8x128xf32, #tpu.memory_space<vmem>>, vector<1x128xf32>,
    %c0_49 = arith.constant 0 : index
    %c0_50 = arith.constant 0 : index
    %116 = vector.load %arg5[%c0_49, %c0_50] : memref<128x128xf32, #tpu.memory_space<vmem>>, vector<128x128xf32>
    %cst_51 = arith.constant dense<0.000000e+00> : vector<1x128xf32>
    %117 = tpu.matmul %112, %116, %cst_51 {dimension_numbers = #tpu.dot_dimension_numbers<[1], [0], [0], [1], [0, 0, 1, 1], [], []>} : vector<1x128xf32>, vector<128x128xf32>, vector<1x128xf32> -> vector<1x128xf32>
    %cst_52 = arith.constant 0.899999976 : f32
    %118 = vector.broadcast %cst_52 : f32 to vector<1x128xf32>
    %119 = arith.mulf %118, %109 : vector<1x128xf32>
    %cst_53 = arith.constant 1.000000e-01 : f32
    %120 = vector.broadcast %cst_53 : f32 to vector<1x128xf32>
    %121 = arith.mulf %120, %117 : vector<1x128xf32>
    %122 = arith.addf %119, %121 : vector<1x128xf32>
    %123 = vector.extract_strided_slice %8 {offsets = [7, 0], sizes = [1, 128], strides = [1, 1]} : vector<8x128xf32> to vector<1x128xf32>
    %124 = arith.addf %122, %123 : vector<1x128xf32>
    %125 = math.tanh %124 : vector<1x128xf32>
    %126 = vector.extract_strided_slice %10 {offsets = [7, 0], sizes = [1, 128], strides = [1, 1]} : vector<8x128xf32> to vector<1x128xf32>
    %127 = arith.addf %125, %126 : vector<1x128xf32>
    %c7_i32 = arith.constant 7 : i32
    %128 = arith.addi %6, %c7_i32 : i32
    %129 = arith.index_cast %128 : i32 to index
    %c0_54 = arith.constant 0 : index
    %130 = vector.load %arg7[%129, %c0_54] : memref<8x128xf32, #tpu.memory_space<vmem>>, vector<1x128xf32>
    tpu.vector_store %arg7[%129, %c0_54], %127 {strides = array<i32>} : memref<8x128xf32, #tpu.memory_space<vmem>>, vector<1x128xf32>,
    %c1_i32_55 = arith.constant 1 : i32
    %c0_56 = arith.constant 0 : index
    %c0_57 = arith.constant 0 : index
    %131 = vector.load %arg9[%c0_56, %c0_57] : memref<1x128xf32, #tpu.memory_space<vmem>>, vector<1x128xf32>
    tpu.vector_store %arg9[%c0_56, %c0_57], %124 {strides = array<i32>} : memref<1x128xf32, #tpu.memory_space<vmem>>, vector<1x128xf32>,
    %c0_58 = arith.constant 0 : index
    %c0_59 = arith.constant 0 : index
    %132 = vector.load %arg10[%c0_58, %c0_59] : memref<1x128xf32, #tpu.memory_space<vmem>>, vector<1x128xf32>
    tpu.vector_store %arg10[%c0_58, %c0_59], %127 {strides = array<i32>} : memref<1x128xf32, #tpu.memory_space<vmem>>, vector<1x128xf32>,
    %c0_60 = arith.constant 0 : index
    %c0_61 = arith.constant 0 : index
    %133 = vector.load %arg7[%c0_60, %c0_61] : memref<8x128xf32, #tpu.memory_space<vmem>>, vector<8x128xf32>
    %c0_62 = arith.constant 0 : index
    %c0_63 = arith.constant 0 : index
    %134 = vector.load %arg6[%c0_62, %c0_63] : memref<128x128xf32, #tpu.memory_space<vmem>>, vector<128x128xf32>
    %cst_64 = arith.constant dense<0.000000e+00> : vector<8x128xf32>
    %135 = tpu.matmul %133, %134, %cst_64 {dimension_numbers = #tpu.dot_dimension_numbers<[1], [0], [0], [1], [0, 0, 1, 1], [], []>} : vector<8x128xf32>, vector<128x128xf32>, vector<8x128xf32> -> vector<8x128xf32>
    %c0_65 = arith.constant 0 : index
    %c0_66 = arith.constant 0 : index
    %136 = vector.load %arg8[%c0_65, %c0_66] : memref<8x128xf32, #tpu.memory_space<vmem>>, vector<8x128xf32>
    tpu.vector_store %arg8[%c0_65, %c0_66], %135 {strides = array<i32>} : memref<8x128xf32, #tpu.memory_space<vmem>>, vector<8x128xf32>,
    return
  }
  func.func @transform_0(%arg0: i32) -> (i32, i32) {
    %c0_i32 = arith.constant 0 : i32
    %c0_i32_0 = arith.constant 0 : i32
    %c0_i32_1 = arith.constant 0 : i32
    return %c0_i32, %c0_i32_0 : i32, i32
  }
  func.func @transform_1(%arg0: i32) -> (i32, i32) {
    %c0_i32 = arith.constant 0 : i32
    %c0_i32_0 = arith.constant 0 : i32
    %c0_i32_1 = arith.constant 0 : i32
    return %c0_i32, %c0_i32_0 : i32, i32
  }
  func.func @transform_2(%arg0: i32) -> (i32, i32) {
    %c0_i32 = arith.constant 0 : i32
    %c0_i32_0 = arith.constant 0 : i32
    return %arg0, %c0_i32 : i32, i32
  }
  func.func @transform_3(%arg0: i32) -> (i32, i32) {
    %c0_i32 = arith.constant 0 : i32
    %c0_i32_0 = arith.constant 0 : i32
    return %arg0, %c0_i32 : i32, i32
  }
  func.func @transform_4(%arg0: i32) -> (i32, i32) {
    %c0_i32 = arith.constant 0 : i32
    %c0_i32_0 = arith.constant 0 : i32
    %c0_i32_1 = arith.constant 0 : i32
    return %c0_i32, %c0_i32_0 : i32, i32
  }
  func.func @transform_5(%arg0: i32) -> (i32, i32) {
    %c0_i32 = arith.constant 0 : i32
    %c0_i32_0 = arith.constant 0 : i32
    %c0_i32_1 = arith.constant 0 : i32
    return %c0_i32, %c0_i32_0 : i32, i32
  }
  func.func @transform_6(%arg0: i32) -> (i32, i32) {
    %c0_i32 = arith.constant 0 : i32
    %c0_i32_0 = arith.constant 0 : i32
    return %arg0, %c0_i32 : i32, i32
  }
  func.func @transform_7(%arg0: i32) -> (i32, i32) {
    %c0_i32 = arith.constant 0 : i32
    %c0_i32_0 = arith.constant 0 : i32
    return %arg0, %c0_i32 : i32, i32
  }
}

</mosaic_0001>

<llo_original>
// kernel: tpu_custom_call.1
$region0: #{tpu_custom_call.1}
  #allocation0 [shape = 'u32[]', space=smem, size = 0x4, offset = 0x4, fixed_abs, tag = 'smem constant byte address 0x4 - core index']
  #allocation1 [shape = 'u32[72,128]{1,0:T(1,128)}', space=vmem, size = 0x9000, scoped, tag = 'internal scratch']
  #allocation2 [shape = 'f32[1,128]{1,0:T(1,128)}', space=vmem, size = 0x200, scoped, tag = 'scratch operand']
  #allocation3 [shape = 'f32[1,128]{1,0:T(1,128)}', space=vmem, size = 0x200, scoped, tag = 'scratch operand']
  %s0 = inlined_call_operand.hbm [shape: f32[1,128], index: 0, kind: input, shape index: {}]
  %s1 = inlined_call_operand.hbm [shape: f32[1,128], index: 1, kind: input, shape index: {}]
  %s2 = inlined_call_operand.hbm [shape: f32[24,128], index: 2, kind: input, shape index: {}]
  %s3 = inlined_call_operand.hbm [shape: f32[24,128], index: 3, kind: input, shape index: {}]
  %s4 = inlined_call_operand.hbm [shape: f32[128,128], index: 4, kind: input, shape index: {}]
  %s5 = inlined_call_operand.hbm [shape: f32[128,128], index: 5, kind: input, shape index: {}]
  %s6 = inlined_call_operand.hbm [shape: f32[24,128], index: 6, kind: output, shape index: {0}]
  %s7 = inlined_call_operand.hbm [shape: f32[24,128], index: 7, kind: output, shape index: {1}]
  %8 = xla_tuple %s6, %s7
  %s9 = sld [smem:[#allocation0]]
  $region93: #{tpu_custom_call.1} parent=0
    _
  %s11 = ssub.s32 1, %s9
  %s12 = scalar_select 0, %s11, %s9
  $region1: #{tpu_custom_call.1} parent=0
    #allocation4 [shape = 'u8[512]{0}', space=vmem, size = 0x400, scoped, tag = 'input window, operand 0, single buffered']
    #allocation5 [shape = 's32[2]{0}', space=sflag, size = 0x8, scoped, tag = 'scoped memory for tpu_custom_call.1']
    #allocation6 [shape = 's32[2]{0}', space=sflag, size = 0x8, scoped, tag = 'scoped memory for tpu_custom_call.1']
    #allocation7 [shape = 'u8[512]{0}', space=vmem, size = 0x400, scoped, tag = 'input window, operand 1, single buffered']
    #allocation8 [shape = 's32[1]{0}', space=sflag, size = 0x4, scoped, tag = 'scoped memory for tpu_custom_call.1']
    #allocation9 [shape = 'u8[8192]{0}', space=vmem, size = 0x2000, scoped, tag = 'input window, operand 2']
    #allocation10 [shape = 'u8[8192]{0}', space=vmem, size = 0x2000, scoped, tag = 'input window, operand 3']
    #allocation11 [shape = 'u8[65536]{0}', space=vmem, size = 0x10000, scoped, tag = 'input window, operand 4, single buffered']
    #allocation12 [shape = 'u8[65536]{0}', space=vmem, size = 0x10000, scoped, tag = 'input window, operand 5, single buffered']
    #allocation13 [shape = 's32[1]{0}', space=sflag, size = 0x4, scoped, tag = 'scoped memory for tpu_custom_call.1']
    #allocation14 [shape = 'u8[8192]{0}', space=vmem, size = 0x2000, scoped, tag = 'output window, operand 0']
    #allocation15 [shape = 'u8[8192]{0}', space=vmem, size = 0x2000, scoped, tag = 'output window, operand 1']
    #allocation16 [shape = 's32[2]{0}', space=sflag, size = 0x8, scoped, tag = 'scoped memory for tpu_custom_call.1']
    %13 = vsyncpa [#allocation5], 0
    %14 = vsyncpa [#allocation8], 0
    %15 = vsyncpa [#allocation13], 0
    %16 = vsyncpa [#allocation6], 0
    %s17 = scalar_lea.sflag [#allocation6], 1
    %18 = vsyncpa %s17, 0
    %19 = vsyncpa [#allocation16], 0
    %s20 = scalar_lea.sflag [#allocation16], 1
    %21 = vsyncpa %s20, 0
    loop: start=0, step=1, limit=5
    $region2: #{tpu_custom_call.1} parent=1 // loop_pre_header
      _
    $region3: #{tpu_custom_call.1} parent=1 // loop_header
      %s23 = sphi 0, %s27
      %p24 = scmp.ge.s32.totalorder %s23, 5
      %s31 = sphi 0, %s31
      %s33 = sphi 0, %s31
      %s34 = sphi 0, %s33
      %s48 = sphi 0, %s34
      %s52 = sphi 0, %s52
      %s54 = sphi 0, %s52
      %s55 = sphi 0, %s54
      %s69 = sphi 0, %s55
      %s75 = sphi 0, %s77
      %s78 = sphi 0, %s75
      %s79 = sphi 0, %s78
      %s95 = sphi 0, %s79
      %s101 = sphi 0, %s103
      %s104 = sphi 0, %s101
      %s105 = sphi 0, %s104
      %s121 = sphi 0, %s105
      %s125 = sphi 0, %s125
      %s127 = sphi 0, %s125
      %s128 = sphi 0, %s127
      %s142 = sphi 0, %s128
      %s146 = sphi 0, %s146
      %s148 = sphi 0, %s146
      %s149 = sphi 0, %s148
      %s163 = sphi 0, %s149
      %s169 = sphi 0, %s171
      %s172 = sphi 0, %s169
      %s173 = sphi 0, %s172
      %s189 = sphi 0, %s173
      %s195 = sphi 0, %s197
      %s198 = sphi 0, %s195
      %s199 = sphi 0, %s198
      %s215 = sphi 0, %s199
    $region4: #{tpu_custom_call.1} parent=1 // loop_header_branch
      %26 = sbr.rel (%p24) target = $region8
    $region5: #{tpu_custom_call.1} parent=1 // loop_body
      %s28 = ssub.s32 %s23, 1
      %s29 = ssub.s32 %s23, 2
      %s30 = sadd.s32 %s23, 1
      %s32 = sadd.s32 %s31, 1
      %p35 = scmp.eq.s32.totalorder %s23, 2
      %p36 = scmp.ne.s32.totalorder %s31, %s33
      %p37 = scmp.eq.s32.totalorder %s23, 0
      %p38 = por %p36, %p37
      %p39 = scmp.ne.s32.totalorder %s31, %s33
      %p40 = scmp.eq.s32.totalorder %s28, 2
      %p41 = por %p39, %p40
      %p42 = scmp.ne.s32.totalorder %s33, %s34
      %p43 = scmp.eq.s32.totalorder %s28, 0
      %p44 = por %p42, %p43
      %p45 = scmp.ne.s32.totalorder %s33, %s34
      %p46 = scmp.eq.s32.totalorder %s29, 2
      %p47 = por %p45, %p46
      %p49 = scmp.ne.s32.totalorder %s34, %s48
      %p50 = scmp.eq.s32.totalorder %s29, 0
      %p51 = por %p49, %p50
      %s53 = sadd.s32 %s52, 1
      %p56 = scmp.eq.s32.totalorder %s23, 2
      %p57 = scmp.ne.s32.totalorder %s52, %s54
      %p58 = scmp.eq.s32.totalorder %s23, 0
      %p59 = por %p57, %p58
      %p60 = scmp.ne.s32.totalorder %s52, %s54
      %p61 = scmp.eq.s32.totalorder %s28, 2
      %p62 = por %p60, %p61
      %p63 = scmp.ne.s32.totalorder %s54, %s55
      %p64 = scmp.eq.s32.totalorder %s28, 0
      %p65 = por %p63, %p64
      %p66 = scmp.ne.s32.totalorder %s54, %s55
      %p67 = scmp.eq.s32.totalorder %s29, 2
      %p68 = por %p66, %p67
      %p70 = scmp.ne.s32.totalorder %s55, %s69
      %p71 = scmp.eq.s32.totalorder %s29, 0
      %p72 = por %p70, %p71
      %s73 = ssub.s32 %s23, %s30
      %p74 = scmp.eq.s32.totalorder %s73, 0
      %s76 = sadd.s32 %s75, 1
      %s77 = scalar_select %p74, %s75, %s76
      %p80 = pneg %p74
      %p81 = scmp.eq.s32.totalorder %s23, 2
      %p82 = por %p80, %p81
      %p83 = scmp.ne.s32.totalorder %s75, %s78
      %p84 = scmp.eq.s32.totalorder %s23, 0
      %p85 = por %p83, %p84
      %p86 = scmp.ne.s32.totalorder %s75, %s78
      %p87 = scmp.eq.s32.totalorder %s28, 2
      %p88 = por %p86, %p87
      %p89 = scmp.ne.s32.totalorder %s78, %s79
      %p90 = scmp.eq.s32.totalorder %s28, 0
      %p91 = por %p89, %p90
      %p92 = scmp.ne.s32.totalorder %s78, %s79
      %p93 = scmp.eq.s32.totalorder %s29, 2
      %p94 = por %p92, %p93
      %p96 = scmp.ne.s32.totalorder %s79, %s95
      %p97 = scmp.eq.s32.totalorder %s29, 0
      %p98 = por %p96, %p97
      %s99 = ssub.s32 %s23, %s30
      %p100 = scmp.eq.s32.totalorder %s99, 0
      %s102 = sadd.s32 %s101, 1
      %s103 = scalar_select %p100, %s101, %s102
      %p106 = pneg %p100
      %p107 = scmp.eq.s32.totalorder %s23, 2
      %p108 = por %p106, %p107
      %p109 = scmp.ne.s32.totalorder %s101, %s104
      %p110 = scmp.eq.s32.totalorder %s23, 0
      %p111 = por %p109, %p110
      %p112 = scmp.ne.s32.totalorder %s101, %s104
      %p113 = scmp.eq.s32.totalorder %s28, 2
      %p114 = por %p112, %p113
      %p115 = scmp.ne.s32.totalorder %s104, %s105
      %p116 = scmp.eq.s32.totalorder %s28, 0
      %p117 = por %p115, %p116
      %p118 = scmp.ne.s32.totalorder %s104, %s105
      %p119 = scmp.eq.s32.totalorder %s29, 2
      %p120 = por %p118, %p119
      %p122 = scmp.ne.s32.totalorder %s105, %s121
      %p123 = scmp.eq.s32.totalorder %s29, 0
      %p124 = por %p122, %p123
      %s126 = sadd.s32 %s125, 1
      %p129 = scmp.eq.s32.totalorder %s23, 2
      %p130 = scmp.ne.s32.totalorder %s125, %s127
      %p131 = scmp.eq.s32.totalorder %s23, 0
      %p132 = por %p130, %p131
      %p133 = scmp.ne.s32.totalorder %s125, %s127
      %p134 = scmp.eq.s32.totalorder %s28, 2
      %p135 = por %p133, %p134
      %p136 = scmp.ne.s32.totalorder %s127, %s128
      %p137 = scmp.eq.s32.totalorder %s28, 0
      %p138 = por %p136, %p137
      %p139 = scmp.ne.s32.totalorder %s127, %s128
      %p140 = scmp.eq.s32.totalorder %s29, 2
      %p141 = por %p139, %p140
      %p143 = scmp.ne.s32.totalorder %s128, %s142
      %p144 = scmp.eq.s32.totalorder %s29, 0
      %p145 = por %p143, %p144
      %s147 = sadd.s32 %s146, 1
      %p150 = scmp.eq.s32.totalorder %s23, 2
      %p151 = scmp.ne.s32.totalorder %s146, %s148
      %p152 = scmp.eq.s32.totalorder %s23, 0
      %p153 = por %p151, %p152
      %p154 = scmp.ne.s32.totalorder %s146, %s148
      %p155 = scmp.eq.s32.totalorder %s28, 2
      %p156 = por %p154, %p155
      %p157 = scmp.ne.s32.totalorder %s148, %s149
      %p158 = scmp.eq.s32.totalorder %s28, 0
      %p159 = por %p157, %p158
      %p160 = scmp.ne.s32.totalorder %s148, %s149
      %p161 = scmp.eq.s32.totalorder %s29, 2
      %p162 = por %p160, %p161
      %p164 = scmp.ne.s32.totalorder %s149, %s163
      %p165 = scmp.eq.s32.totalorder %s29, 0
      %p166 = por %p164, %p165
      %s167 = ssub.s32 %s23, %s30
      %p168 = scmp.eq.s32.totalorder %s167, 0
      %s170 = sadd.s32 %s169, 1
      %s171 = scalar_select %p168, %s169, %s170
      %p174 = pneg %p168
      %p175 = scmp.eq.s32.totalorder %s23, 2
      %p176 = por %p174, %p175
      %p177 = scmp.ne.s32.totalorder %s169, %s172
      %p178 = scmp.eq.s32.totalorder %s23, 0
      %p179 = por %p177, %p178
      %p180 = scmp.ne.s32.totalorder %s169, %s172
      %p181 = scmp.eq.s32.totalorder %s28, 2
      %p182 = por %p180, %p181
      %p183 = scmp.ne.s32.totalorder %s172, %s173
      %p184 = scmp.eq.s32.totalorder %s28, 0
      %p185 = por %p183, %p184
      %p186 = scmp.ne.s32.totalorder %s172, %s173
      %p187 = scmp.eq.s32.totalorder %s29, 2
      %p188 = por %p186, %p187
      %p190 = scmp.ne.s32.totalorder %s173, %s189
      %p191 = scmp.eq.s32.totalorder %s29, 0
      %p192 = por %p190, %p191
      %s193 = ssub.s32 %s23, %s30
      %p194 = scmp.eq.s32.totalorder %s193, 0
      %s196 = sadd.s32 %s195, 1
      %s197 = scalar_select %p194, %s195, %s196
      %p200 = pneg %p194
      %p201 = scmp.eq.s32.totalorder %s23, 2
      %p202 = por %p200, %p201
      %p203 = scmp.ne.s32.totalorder %s195, %s198
      %p204 = scmp.eq.s32.totalorder %s23, 0
      %p205 = por %p203, %p204
      %p206 = scmp.ne.s32.totalorder %s195, %s198
      %p207 = scmp.eq.s32.totalorder %s28, 2
      %p208 = por %p206, %p207
      %p209 = scmp.ne.s32.totalorder %s198, %s199
      %p210 = scmp.eq.s32.totalorder %s28, 0
      %p211 = por %p209, %p210
      %p212 = scmp.ne.s32.totalorder %s198, %s199
      %p213 = scmp.eq.s32.totalorder %s29, 2
      %p214 = por %p212, %p213
      %p216 = scmp.ne.s32.totalorder %s199, %s215
      %p217 = scmp.eq.s32.totalorder %s29, 0
      %p218 = por %p216, %p217
      %p219 = scmp.le.s32.totalorder 1, %s23
      %p220 = scmp.lt.s32.totalorder %s23, 4
      %p221 = pnand %p219, %p220
      %p222 = pneg %p221
      // Predicated region
      $region9: #{tpu_custom_call.1} parent=5 // pred_check
        _
      $region10: #{tpu_custom_call.1} parent=5 // pred_check_branch
        %224 = sbr.rel (%p221) target = $region12
      $region11: #{tpu_custom_call.1} parent=5 // pred_region
        %s225 = ssub.s32 %s23, 1
        // Predicated region
        $region13: #{tpu_custom_call.1} parent=11 // pred_check
          %p226 = pneg %p44
        $region14: #{tpu_custom_call.1} parent=11 // pred_check_branch
          %228 = sbr.rel (%p226) target = $region16
        $region15: #{tpu_custom_call.1} parent=11 // pred_region
          %230 = vsyncadd [#allocation5], 0
          %s232 = sshll.u32 %s0, 4
          %s233 = int_to_ptr.hbm [resolvable:$true] %s232
          %s234 = sshll.u32 [#allocation4], 4
          %s235 = int_to_ptr.vmem [resolvable:$true] %s234
          %237 = dma.hbm_to_vmem [thread:$0]  %s233, 16, %s235, [#allocation5]
        $region16: #{tpu_custom_call.1} parent=11 // pred_fallthru
          _
        // Predicated region
        $region17: #{tpu_custom_call.1} parent=11 // pred_check
          %p238 = pneg %p65
        $region18: #{tpu_custom_call.1} parent=11 // pred_check_branch
          %240 = sbr.rel (%p238) target = $region20
        $region19: #{tpu_custom_call.1} parent=11 // pred_region
          %242 = vsyncadd [#allocation8], 0
          %s244 = sshll.u32 %s1, 4
          %s245 = int_to_ptr.hbm [resolvable:$true] %s244
          %s246 = sshll.u32 [#allocation7], 4
          %s247 = int_to_ptr.vmem [resolvable:$true] %s246
          %249 = dma.hbm_to_vmem [thread:$0]  %s245, 16, %s247, [#allocation8]
        $region20: #{tpu_custom_call.1} parent=11 // pred_fallthru
          _
        // Predicated region
        $region21: #{tpu_custom_call.1} parent=11 // pred_check
          %p250 = pneg %p138
        $region22: #{tpu_custom_call.1} parent=11 // pred_check_branch
          %252 = sbr.rel (%p250) target = $region24
        $region23: #{tpu_custom_call.1} parent=11 // pred_region
          %254 = vsyncadd [#allocation8], 0
          %s255 = sshll.u32 %s4, 4
          %s256 = int_to_ptr.hbm [resolvable:$true] %s255
          %s257 = sshll.u32 [#allocation11], 4
          %s258 = int_to_ptr.vmem [resolvable:$true] %s257
          %263 = dma.hbm_to_vmem [thread:$0]  %s256, 2048, %s258, [#allocation8], 128, 128, 8
        $region24: #{tpu_custom_call.1} parent=11 // pred_fallthru
          _
        // Predicated region
        $region25: #{tpu_custom_call.1} parent=11 // pred_check
          %p264 = pneg %p159
        $region26: #{tpu_custom_call.1} parent=11 // pred_check_branch
          %266 = sbr.rel (%p264) target = $region28
        $region27: #{tpu_custom_call.1} parent=11 // pred_region
          %268 = vsyncadd [#allocation13], 0
          %s269 = sshll.u32 %s5, 4
          %s270 = int_to_ptr.hbm [resolvable:$true] %s269
          %s271 = sshll.u32 [#allocation12], 4
          %s272 = int_to_ptr.vmem [resolvable:$true] %s271
          %277 = dma.hbm_to_vmem [thread:$0]  %s270, 2048, %s272, [#allocation13], 128, 128, 8
        $region28: #{tpu_custom_call.1} parent=11 // pred_fallthru
          _
      $region12: #{tpu_custom_call.1} parent=5 // pred_fallthru
        _
      %p278 = scmp.lt.s32.totalorder %s23, 3
      // Predicated region
      $region29: #{tpu_custom_call.1} parent=5 // pred_check
        %p279 = pneg %p278
      $region30: #{tpu_custom_call.1} parent=5 // pred_check_branch
        %281 = sbr.rel (%p279) target = $region32
      $region31: #{tpu_custom_call.1} parent=5 // pred_region
        // Predicated region
        $region33: #{tpu_custom_call.1} parent=31 // pred_check
          %p282 = pneg %p85
        $region34: #{tpu_custom_call.1} parent=31 // pred_check_branch
          %284 = sbr.rel (%p282) target = $region36
        $region35: #{tpu_custom_call.1} parent=31 // pred_region
          %s285 = sand.u32 %s23, 1
          %s286 = scalar_lea.sflag [#allocation5], %s285
          %s287 = sand.u32 %s75, 1
          %s288 = smul.addr %s287, 8
          %s289 = scalar_lea.vmem [#allocation9], %s288
          %291 = vsyncadd %s286, 0
          %s292 = smul.addr %s23, 8
          %s293 = scalar_lea.hbm %s2, %s292
          %s295 = sshll.u32 %s293, 4
          %s296 = int_to_ptr.hbm [resolvable:$true] %s295
          %s297 = sshll.u32 %s289, 4
          %s298 = int_to_ptr.vmem [resolvable:$true] %s297
          %300 = dma.hbm_to_vmem [thread:$0]  %s296, 128, %s298, %s286
        $region36: #{tpu_custom_call.1} parent=31 // pred_fallthru
          _
        // Predicated region
        $region37: #{tpu_custom_call.1} parent=31 // pred_check
          %p301 = pneg %p111
        $region38: #{tpu_custom_call.1} parent=31 // pred_check_branch
          %303 = sbr.rel (%p301) target = $region40
        $region39: #{tpu_custom_call.1} parent=31 // pred_region
          %s304 = sand.u32 %s23, 1
          %s305 = scalar_lea.sflag [#allocation5], %s304
          %s306 = sand.u32 %s101, 1
          %s307 = smul.addr %s306, 8
          %s308 = scalar_lea.vmem [#allocation10], %s307
          %310 = vsyncadd %s305, 0
          %s311 = smul.addr %s23, 8
          %s312 = scalar_lea.hbm %s3, %s311
          %s314 = sshll.u32 %s312, 4
          %s315 = int_to_ptr.hbm [resolvable:$true] %s314
          %s316 = sshll.u32 %s308, 4
          %s317 = int_to_ptr.vmem [resolvable:$true] %s316
          %319 = dma.hbm_to_vmem [thread:$0]  %s315, 128, %s317, %s305
        $region40: #{tpu_custom_call.1} parent=31 // pred_fallthru
          _
      $region32: #{tpu_custom_call.1} parent=5 // pred_fallthru
        _
      %p320 = scmp.le.s32.totalorder 1, %s23
      %p321 = scmp.lt.s32.totalorder %s23, 4
      %p322 = pnand %p320, %p321
      %p323 = pneg %p322
      // Predicated region
      $region41: #{tpu_custom_call.1} parent=5 // pred_check
        _
      $region42: #{tpu_custom_call.1} parent=5 // pred_check_branch
        %325 = sbr.rel (%p322) target = $region44
      $region43: #{tpu_custom_call.1} parent=5 // pred_region
        %s326 = ssub.s32 %s23, 1
        // Predicated region
        $region45: #{tpu_custom_call.1} parent=43 // pred_check
          %p327 = pneg %p44
        $region46: #{tpu_custom_call.1} parent=43 // pred_check_branch
          %329 = sbr.rel (%p327) target = $region48
        $region47: #{tpu_custom_call.1} parent=43 // pred_region
          %331 = dma.done [#allocation5], 16
        $region48: #{tpu_custom_call.1} parent=43 // pred_fallthru
          _
        // Predicated region
        $region49: #{tpu_custom_call.1} parent=43 // pred_check
          %p332 = pneg %p65
        $region50: #{tpu_custom_call.1} parent=43 // pred_check_branch
          %334 = sbr.rel (%p332) target = $region52
        $region51: #{tpu_custom_call.1} parent=43 // pred_region
          %336 = dma.done [#allocation8], 16
        $region52: #{tpu_custom_call.1} parent=43 // pred_fallthru
          _
        %s337 = sand.u32 %s28, 1
        %s338 = scalar_lea.sflag [#allocation5], %s337
        %s339 = sand.u32 %s78, 1
        %s340 = smul.addr %s339, 8
        %s341 = scalar_lea.vmem [#allocation9], %s340
        // Predicated region
        $region53: #{tpu_custom_call.1} parent=43 // pred_check
          %p342 = pneg %p91
        $region54: #{tpu_custom_call.1} parent=43 // pred_check_branch
          %344 = sbr.rel (%p342) target = $region56
        $region55: #{tpu_custom_call.1} parent=43 // pred_region
          %346 = dma.done %s338, 128
        $region56: #{tpu_custom_call.1} parent=43 // pred_fallthru
          _
        %s347 = sand.u32 %s28, 1
        %s348 = scalar_lea.sflag [#allocation5], %s347
        %s349 = sand.u32 %s104, 1
        %s350 = smul.addr %s349, 8
        %s351 = scalar_lea.vmem [#allocation10], %s350
        // Predicated region
        $region57: #{tpu_custom_call.1} parent=43 // pred_check
          %p352 = pneg %p117
        $region58: #{tpu_custom_call.1} parent=43 // pred_check_branch
          %354 = sbr.rel (%p352) target = $region60
        $region59: #{tpu_custom_call.1} parent=43 // pred_region
          %356 = dma.done %s348, 128
        $region60: #{tpu_custom_call.1} parent=43 // pred_fallthru
          _
        // Predicated region
        $region61: #{tpu_custom_call.1} parent=43 // pred_check
          %p357 = pneg %p138
        $region62: #{tpu_custom_call.1} parent=43 // pred_check_branch
          %359 = sbr.rel (%p357) target = $region64
        $region63: #{tpu_custom_call.1} parent=43 // pred_region
          %361 = dma.done [#allocation8], 2048
        $region64: #{tpu_custom_call.1} parent=43 // pred_fallthru
          _
        // Predicated region
        $region65: #{tpu_custom_call.1} parent=43 // pred_check
          %p362 = pneg %p159
        $region66: #{tpu_custom_call.1} parent=43 // pred_check_branch
          %364 = sbr.rel (%p362) target = $region68
        $region67: #{tpu_custom_call.1} parent=43 // pred_region
          %366 = dma.done [#allocation13], 2048
        $region68: #{tpu_custom_call.1} parent=43 // pred_fallthru
          _
        %p367 = pneg %p44
        %p368 = pneg %p41
        %p369 = pneg %p65
        %p370 = pneg %p62
        %s371 = sand.u32 %s28, 1
        %s372 = scalar_lea.sflag [#allocation5], %s371
        %s373 = sand.u32 %s78, 1
        %s374 = smul.addr %s373, 8
        %s375 = scalar_lea.vmem [#allocation9], %s374
        %p376 = pneg %p91
        %p377 = pneg %p88
        %s378 = sand.u32 %s28, 1
        %s379 = scalar_lea.sflag [#allocation5], %s378
        %s380 = sand.u32 %s104, 1
        %s381 = smul.addr %s380, 8
        %s382 = scalar_lea.vmem [#allocation10], %s381
        %p383 = pneg %p117
        %p384 = pneg %p114
        %p385 = pneg %p138
        %p386 = pneg %p135
        %p387 = pneg %p159
        %p388 = pneg %p156
        %p389 = pneg %p185
        %p390 = pneg %p182
        %s391 = sand.u32 %s172, 1
        %s392 = scalar_lea.sflag [#allocation6], %s391
        %s393 = sand.u32 %s172, 1
        %s394 = smul.addr %s393, 8
        %s395 = scalar_lea.vmem [#allocation14], %s394
        %p396 = pneg %p211
        %p397 = pneg %p208
        %s398 = sand.u32 %s198, 1
        %s399 = scalar_lea.sflag [#allocation16], %s398
        %s400 = sand.u32 %s198, 1
        %s401 = smul.addr %s400, 8
        %s402 = scalar_lea.vmem [#allocation15], %s401
        %p403 = scmp.eq.s32.totalorder %s28, 0
        // Predicated region
        $region69: #{tpu_custom_call.1} parent=43 // pred_check
          %p404 = pneg %p403
        $region70: #{tpu_custom_call.1} parent=43 // pred_check_branch
          %406 = sbr.rel (%p404) target = $region72
        $region71: #{tpu_custom_call.1} parent=43 // pred_region
          %v407 = vld [vmem:[#allocation4] sm:$0x1]
          %408 = vst [vmem:[#allocation2] sm:$0x1] %v407
          %v409 = vld [vmem:[#allocation7] sm:$0x1]
          %410 = vst [vmem:[#allocation3] sm:$0x1] %v409
        $region72: #{tpu_custom_call.1} parent=43 // pred_fallthru
          _
        %v411 = vld [vmem:[#allocation2] sm:$0x1]
        %v412 = vld [vmem:[#allocation3] sm:$0x1]
        %v413 = vld [vmem:[%s341] sm:$0xff]
        %v414 = vld [vmem:[%s351] sm:$0xff]
        %v415 = vld [vmem:[#allocation11] sm:$0xff]
        %v416 = vld [vmem:[#allocation11 + $0x8] sm:$0xff]
        %v417 = vld [vmem:[#allocation11 + $0x10] sm:$0xff]
        %v418 = vld [vmem:[#allocation11 + $0x18] sm:$0xff]
        %v419 = vld [vmem:[#allocation11 + $0x20] sm:$0xff]
        %v420 = vld [vmem:[#allocation11 + $0x28] sm:$0xff]
        %v421 = vld [vmem:[#allocation11 + $0x30] sm:$0xff]
        %v422 = vld [vmem:[#allocation11 + $0x38] sm:$0xff]
        %v423 = vld [vmem:[#allocation11 + $0x40] sm:$0xff]
        %v424 = vld [vmem:[#allocation11 + $0x48] sm:$0xff]
        %v425 = vld [vmem:[#allocation11 + $0x50] sm:$0xff]
        %v426 = vld [vmem:[#allocation11 + $0x58] sm:$0xff]
        %v427 = vld [vmem:[#allocation11 + $0x60] sm:$0xff]
        %v428 = vld [vmem:[#allocation11 + $0x68] sm:$0xff]
        %v429 = vld [vmem:[#allocation11 + $0x70] sm:$0xff]
        %v430 = vld [vmem:[#allocation11 + $0x78] sm:$0xff]
        %431 = vmatpush.msra.mxu0 %v430
        %432 = vmatpush.msra.mxu0 %v429
        %433 = vmatpush.msra.mxu0 %v428
        %434 = vmatpush.msra.mxu0 %v427
        %435 = vmatpush.msra.mxu0 %v426
        %436 = vmatpush.msra.mxu0 %v425
        %437 = vmatpush.msra.mxu0 %v424
        %438 = vmatpush.msra.mxu0 %v423
        %439 = vmatpush.msra.mxu0 %v422
        %440 = vmatpush.msra.mxu0 %v421
        %441 = vmatpush.msra.mxu0 %v420
        %442 = vmatpush.msra.mxu0 %v419
        %443 = vmatpush.msra.mxu0 %v418
        %444 = vmatpush.msra.mxu0 %v417
        %445 = vmatpush.msra.mxu0 %v416
        %446 = vmatpush.msra.mxu0 %v415
        %447 = vmatmul.f32.gmra.mxu0 %v412
        %v448 = vpop.f32.mrf.mxu0
        %v449 = vadd.f32 0.0, %v448
        %450 = vdwg.mxu0
        %v451 = vmul.f32 %v411, 0.9
        %v452 = vmul.f32 %v449, 0.1
        %v453 = vadd.f32 %v451, %v452
        %v454 = vadd.f32 %v453, %v413
        %v455 = vtanh.pop %v454
        %v456 = vadd.f32 %v455, %v414
        %457 = vst [vmem:[%s395] sm:$0x1] %v456
        %v458 = vld [vmem:[#allocation11] sm:$0xff]
        %v459 = vld [vmem:[#allocation11 + $0x8] sm:$0xff]
        %v460 = vld [vmem:[#allocation11 + $0x10] sm:$0xff]
        %v461 = vld [vmem:[#allocation11 + $0x18] sm:$0xff]
        %v462 = vld [vmem:[#allocation11 + $0x20] sm:$0xff]
        %v463 = vld [vmem:[#allocation11 + $0x28] sm:$0xff]
        %v464 = vld [vmem:[#allocation11 + $0x30] sm:$0xff]
        %v465 = vld [vmem:[#allocation11 + $0x38] sm:$0xff]
        %v466 = vld [vmem:[#allocation11 + $0x40] sm:$0xff]
        %v467 = vld [vmem:[#allocation11 + $0x48] sm:$0xff]
        %v468 = vld [vmem:[#allocation11 + $0x50] sm:$0xff]
        %v469 = vld [vmem:[#allocation11 + $0x58] sm:$0xff]
        %v470 = vld [vmem:[#allocation11 + $0x60] sm:$0xff]
        %v471 = vld [vmem:[#allocation11 + $0x68] sm:$0xff]
        %v472 = vld [vmem:[#allocation11 + $0x70] sm:$0xff]
        %v473 = vld [vmem:[#allocation11 + $0x78] sm:$0xff]
        %474 = vmatpush.msra.mxu0 %v473
        %475 = vmatpush.msra.mxu0 %v472
        %476 = vmatpush.msra.mxu0 %v471
        %477 = vmatpush.msra.mxu0 %v470
        %478 = vmatpush.msra.mxu0 %v469
        %479 = vmatpush.msra.mxu0 %v468
        %480 = vmatpush.msra.mxu0 %v467
        %481 = vmatpush.msra.mxu0 %v466
        %482 = vmatpush.msra.mxu0 %v465
        %483 = vmatpush.msra.mxu0 %v464
        %484 = vmatpush.msra.mxu0 %v463
        %485 = vmatpush.msra.mxu0 %v462
        %486 = vmatpush.msra.mxu0 %v461
        %487 = vmatpush.msra.mxu0 %v460
        %488 = vmatpush.msra.mxu0 %v459
        %489 = vmatpush.msra.mxu0 %v458
        %490 = vmatmul.f32.gmra.mxu0 %v456
        %v491 = vpop.f32.mrf.mxu0
        %v492 = vadd.f32 0.0, %v491
        %493 = vdwg.mxu0
        %v494 = vmul.f32 %v454, 0.9
        %v495 = vmul.f32 %v492, 0.1
        %v496 = vadd.f32 %v494, %v495
        %498 = vst [vmem:[#allocation1] sm:$0xff] %v413
        %s499 = scalar_lea.vmem [#allocation1], 1
        %v500 = vld [vmem:[%s499] ss:$9 sm:$0xff]
        %v502 = vadd.f32 %v496, %v500
        %v503 = vtanh.pop %v502
        %505 = vst [vmem:[#allocation1] sm:$0xff] %v414
        %s506 = scalar_lea.vmem [#allocation1], 1
        %v507 = vld [vmem:[%s506] ss:$9 sm:$0xff]
        %v509 = vadd.f32 %v503, %v507
        %s510 = sadd.s32 0, 1
        %s511 = scalar_lea.vmem %s395, %s510 [#allocation14]
        %512 = vst [vmem:[%s511] sm:$0x1] %v509
        %v513 = vld [vmem:[#allocation11] sm:$0xff]
        %v514 = vld [vmem:[#allocation11 + $0x8] sm:$0xff]
        %v515 = vld [vmem:[#allocation11 + $0x10] sm:$0xff]
        %v516 = vld [vmem:[#allocation11 + $0x18] sm:$0xff]
        %v517 = vld [vmem:[#allocation11 + $0x20] sm:$0xff]
        %v518 = vld [vmem:[#allocation11 + $0x28] sm:$0xff]
        %v519 = vld [vmem:[#allocation11 + $0x30] sm:$0xff]
        %v520 = vld [vmem:[#allocation11 + $0x38] sm:$0xff]
        %v521 = vld [vmem:[#allocation11 + $0x40] sm:$0xff]
        %v522 = vld [vmem:[#allocation11 + $0x48] sm:$0xff]
        %v523 = vld [vmem:[#allocation11 + $0x50] sm:$0xff]
        %v524 = vld [vmem:[#allocation11 + $0x58] sm:$0xff]
        %v525 = vld [vmem:[#allocation11 + $0x60] sm:$0xff]
        %v526 = vld [vmem:[#allocation11 + $0x68] sm:$0xff]
        %v527 = vld [vmem:[#allocation11 + $0x70] sm:$0xff]
        %v528 = vld [vmem:[#allocation11 + $0x78] sm:$0xff]
        %529 = vmatpush.msra.mxu0 %v528
        %530 = vmatpush.msra.mxu0 %v527
        %531 = vmatpush.msra.mxu0 %v526
        %532 = vmatpush.msra.mxu0 %v525
        %533 = vmatpush.msra.mxu0 %v524
        %534 = vmatpush.msra.mxu0 %v523
        %535 = vmatpush.msra.mxu0 %v522
        %536 = vmatpush.msra.mxu0 %v521
        %537 = vmatpush.msra.mxu0 %v520
        %538 = vmatpush.msra.mxu0 %v519
        %539 = vmatpush.msra.mxu0 %v518
        %540 = vmatpush.msra.mxu0 %v517
        %541 = vmatpush.msra.mxu0 %v516
        %542 = vmatpush.msra.mxu0 %v515
        %543 = vmatpush.msra.mxu0 %v514
        %544 = vmatpush.msra.mxu0 %v513
        %545 = vmatmul.f32.gmra.mxu0 %v509
        %v546 = vpop.f32.mrf.mxu0
        %v547 = vadd.f32 0.0, %v546
        %548 = vdwg.mxu0
        %v549 = vmul.f32 %v502, 0.9
        %v550 = vmul.f32 %v547, 0.1
        %v551 = vadd.f32 %v549, %v550
        %552 = vst [vmem:[#allocation1] sm:$0xff] %v413
        %s553 = scalar_lea.vmem [#allocation1], 2
        %v554 = vld [vmem:[%s553] ss:$9 sm:$0xff]
        %v556 = vadd.f32 %v551, %v554
        %v557 = vtanh.pop %v556
        %558 = vst [vmem:[#allocation1] sm:$0xff] %v414
        %s559 = scalar_lea.vmem [#allocation1], 2
        %v560 = vld [vmem:[%s559] ss:$9 sm:$0xff]
        %v562 = vadd.f32 %v557, %v560
        %s563 = sadd.s32 0, 2
        %s564 = scalar_lea.vmem %s395, %s563 [#allocation14]
        %565 = vst [vmem:[%s564] sm:$0x1] %v562
        %v566 = vld [vmem:[#allocation11] sm:$0xff]
        %v567 = vld [vmem:[#allocation11 + $0x8] sm:$0xff]
        %v568 = vld [vmem:[#allocation11 + $0x10] sm:$0xff]
        %v569 = vld [vmem:[#allocation11 + $0x18] sm:$0xff]
        %v570 = vld [vmem:[#allocation11 + $0x20] sm:$0xff]
        %v571 = vld [vmem:[#allocation11 + $0x28] sm:$0xff]
        %v572 = vld [vmem:[#allocation11 + $0x30] sm:$0xff]
        %v573 = vld [vmem:[#allocation11 + $0x38] sm:$0xff]
        %v574 = vld [vmem:[#allocation11 + $0x40] sm:$0xff]
        %v575 = vld [vmem:[#allocation11 + $0x48] sm:$0xff]
        %v576 = vld [vmem:[#allocation11 + $0x50] sm:$0xff]
        %v577 = vld [vmem:[#allocation11 + $0x58] sm:$0xff]
        %v578 = vld [vmem:[#allocation11 + $0x60] sm:$0xff]
        %v579 = vld [vmem:[#allocation11 + $0x68] sm:$0xff]
        %v580 = vld [vmem:[#allocation11 + $0x70] sm:$0xff]
        %v581 = vld [vmem:[#allocation11 + $0x78] sm:$0xff]
        %582 = vmatpush.msra.mxu0 %v581
        %583 = vmatpush.msra.mxu0 %v580
        %584 = vmatpush.msra.mxu0 %v579
        %585 = vmatpush.msra.mxu0 %v578
        %586 = vmatpush.msra.mxu0 %v577
        %587 = vmatpush.msra.mxu0 %v576
        %588 = vmatpush.msra.mxu0 %v575
        %589 = vmatpush.msra.mxu0 %v574
        %590 = vmatpush.msra.mxu0 %v573
        %591 = vmatpush.msra.mxu0 %v572
        %592 = vmatpush.msra.mxu0 %v571
        %593 = vmatpush.msra.mxu0 %v570
        %594 = vmatpush.msra.mxu0 %v569
        %595 = vmatpush.msra.mxu0 %v568
        %596 = vmatpush.msra.mxu0 %v567
        %597 = vmatpush.msra.mxu0 %v566
        %598 = vmatmul.f32.gmra.mxu0 %v562
        %v599 = vpop.f32.mrf.mxu0
        %v600 = vadd.f32 0.0, %v599
        %601 = vdwg.mxu0
        %v602 = vmul.f32 %v556, 0.9
        %v603 = vmul.f32 %v600, 0.1
        %v604 = vadd.f32 %v602, %v603
        %605 = vst [vmem:[#allocation1] sm:$0xff] %v413
        %s606 = scalar_lea.vmem [#allocation1], 3
        %v607 = vld [vmem:[%s606] ss:$9 sm:$0xff]
        %v609 = vadd.f32 %v604, %v607
        %v610 = vtanh.pop %v609
        %611 = vst [vmem:[#allocation1] sm:$0xff] %v414
        %s612 = scalar_lea.vmem [#allocation1], 3
        %v613 = vld [vmem:[%s612] ss:$9 sm:$0xff]
        %v615 = vadd.f32 %v610, %v613
        %s616 = sadd.s32 0, 3
        %s617 = scalar_lea.vmem %s395, %s616 [#allocation14]
        %618 = vst [vmem:[%s617] sm:$0x1] %v615
        %v619 = vld [vmem:[#allocation11] sm:$0xff]
        %v620 = vld [vmem:[#allocation11 + $0x8] sm:$0xff]
        %v621 = vld [vmem:[#allocation11 + $0x10] sm:$0xff]
        %v622 = vld [vmem:[#allocation11 + $0x18] sm:$0xff]
        %v623 = vld [vmem:[#allocation11 + $0x20] sm:$0xff]
        %v624 = vld [vmem:[#allocation11 + $0x28] sm:$0xff]
        %v625 = vld [vmem:[#allocation11 + $0x30] sm:$0xff]
        %v626 = vld [vmem:[#allocation11 + $0x38] sm:$0xff]
        %v627 = vld [vmem:[#allocation11 + $0x40] sm:$0xff]
        %v628 = vld [vmem:[#allocation11 + $0x48] sm:$0xff]
        %v629 = vld [vmem:[#allocation11 + $0x50] sm:$0xff]
        %v630 = vld [vmem:[#allocation11 + $0x58] sm:$0xff]
        %v631 = vld [vmem:[#allocation11 + $0x60] sm:$0xff]
        %v632 = vld [vmem:[#allocation11 + $0x68] sm:$0xff]
        %v633 = vld [vmem:[#allocation11 + $0x70] sm:$0xff]
        %v634 = vld [vmem:[#allocation11 + $0x78] sm:$0xff]
        %635 = vmatpush.msra.mxu0 %v634
        %636 = vmatpush.msra.mxu0 %v633
        %637 = vmatpush.msra.mxu0 %v632
        %638 = vmatpush.msra.mxu0 %v631
        %639 = vmatpush.msra.mxu0 %v630
        %640 = vmatpush.msra.mxu0 %v629
        %641 = vmatpush.msra.mxu0 %v628
        %642 = vmatpush.msra.mxu0 %v627
        %643 = vmatpush.msra.mxu0 %v626
        %644 = vmatpush.msra.mxu0 %v625
        %645 = vmatpush.msra.mxu0 %v624
        %646 = vmatpush.msra.mxu0 %v623
        %647 = vmatpush.msra.mxu0 %v622
        %648 = vmatpush.msra.mxu0 %v621
        %649 = vmatpush.msra.mxu0 %v620
        %650 = vmatpush.msra.mxu0 %v619
        %651 = vmatmul.f32.gmra.mxu0 %v615
        %v652 = vpop.f32.mrf.mxu0
        %v653 = vadd.f32 0.0, %v652
        %654 = vdwg.mxu0
        %v655 = vmul.f32 %v609, 0.9
        %v656 = vmul.f32 %v653, 0.1
        %v657 = vadd.f32 %v655, %v656
        %658 = vst [vmem:[#allocation1] sm:$0xff] %v413
        %s659 = scalar_lea.vmem [#allocation1], 4
        %v660 = vld [vmem:[%s659] ss:$9 sm:$0xff]
        %v662 = vadd.f32 %v657, %v660
        %v663 = vtanh.pop %v662
        %664 = vst [vmem:[#allocation1] sm:$0xff] %v414
        %s665 = scalar_lea.vmem [#allocation1], 4
        %v666 = vld [vmem:[%s665] ss:$9 sm:$0xff]
        %v668 = vadd.f32 %v663, %v666
        %s669 = sadd.s32 0, 4
        %s670 = scalar_lea.vmem %s395, %s669 [#allocation14]
        %671 = vst [vmem:[%s670] sm:$0x1] %v668
        %v672 = vld [vmem:[#allocation11] sm:$0xff]
        %v673 = vld [vmem:[#allocation11 + $0x8] sm:$0xff]
        %v674 = vld [vmem:[#allocation11 + $0x10] sm:$0xff]
        %v675 = vld [vmem:[#allocation11 + $0x18] sm:$0xff]
        %v676 = vld [vmem:[#allocation11 + $0x20] sm:$0xff]
        %v677 = vld [vmem:[#allocation11 + $0x28] sm:$0xff]
        %v678 = vld [vmem:[#allocation11 + $0x30] sm:$0xff]
        %v679 = vld [vmem:[#allocation11 + $0x38] sm:$0xff]
        %v680 = vld [vmem:[#allocation11 + $0x40] sm:$0xff]
        %v681 = vld [vmem:[#allocation11 + $0x48] sm:$0xff]
        %v682 = vld [vmem:[#allocation11 + $0x50] sm:$0xff]
        %v683 = vld [vmem:[#allocation11 + $0x58] sm:$0xff]
        %v684 = vld [vmem:[#allocation11 + $0x60] sm:$0xff]
        %v685 = vld [vmem:[#allocation11 + $0x68] sm:$0xff]
        %v686 = vld [vmem:[#allocation11 + $0x70] sm:$0xff]
        %v687 = vld [vmem:[#allocation11 + $0x78] sm:$0xff]
        %688 = vmatpush.msra.mxu0 %v687
        %689 = vmatpush.msra.mxu0 %v686
        %690 = vmatpush.msra.mxu0 %v685
        %691 = vmatpush.msra.mxu0 %v684
        %692 = vmatpush.msra.mxu0 %v683
        %693 = vmatpush.msra.mxu0 %v682
        %694 = vmatpush.msra.mxu0 %v681
        %695 = vmatpush.msra.mxu0 %v680
        %696 = vmatpush.msra.mxu0 %v679
        %697 = vmatpush.msra.mxu0 %v678
        %698 = vmatpush.msra.mxu0 %v677
        %699 = vmatpush.msra.mxu0 %v676
        %700 = vmatpush.msra.mxu0 %v675
        %701 = vmatpush.msra.mxu0 %v674
        %702 = vmatpush.msra.mxu0 %v673
        %703 = vmatpush.msra.mxu0 %v672
        %704 = vmatmul.f32.gmra.mxu0 %v668
        %v705 = vpop.f32.mrf.mxu0
        %v706 = vadd.f32 0.0, %v705
        %707 = vdwg.mxu0
        %v708 = vmul.f32 %v662, 0.9
        %v709 = vmul.f32 %v706, 0.1
        %v710 = vadd.f32 %v708, %v709
        %711 = vst [vmem:[#allocation1] sm:$0xff] %v413
        %s712 = scalar_lea.vmem [#allocation1], 5
        %v713 = vld [vmem:[%s712] ss:$9 sm:$0xff]
        %v715 = vadd.f32 %v710, %v713
        %v716 = vtanh.pop %v715
        %717 = vst [vmem:[#allocation1] sm:$0xff] %v414
        %s718 = scalar_lea.vmem [#allocation1], 5
        %v719 = vld [vmem:[%s718] ss:$9 sm:$0xff]
        %v721 = vadd.f32 %v716, %v719
        %s722 = sadd.s32 0, 5
        %s723 = scalar_lea.vmem %s395, %s722 [#allocation14]
        %724 = vst [vmem:[%s723] sm:$0x1] %v721
        %v725 = vld [vmem:[#allocation11] sm:$0xff]
        %v726 = vld [vmem:[#allocation11 + $0x8] sm:$0xff]
        %v727 = vld [vmem:[#allocation11 + $0x10] sm:$0xff]
        %v728 = vld [vmem:[#allocation11 + $0x18] sm:$0xff]
        %v729 = vld [vmem:[#allocation11 + $0x20] sm:$0xff]
        %v730 = vld [vmem:[#allocation11 + $0x28] sm:$0xff]
        %v731 = vld [vmem:[#allocation11 + $0x30] sm:$0xff]
        %v732 = vld [vmem:[#allocation11 + $0x38] sm:$0xff]
        %v733 = vld [vmem:[#allocation11 + $0x40] sm:$0xff]
        %v734 = vld [vmem:[#allocation11 + $0x48] sm:$0xff]
        %v735 = vld [vmem:[#allocation11 + $0x50] sm:$0xff]
        %v736 = vld [vmem:[#allocation11 + $0x58] sm:$0xff]
        %v737 = vld [vmem:[#allocation11 + $0x60] sm:$0xff]
        %v738 = vld [vmem:[#allocation11 + $0x68] sm:$0xff]
        %v739 = vld [vmem:[#allocation11 + $0x70] sm:$0xff]
        %v740 = vld [vmem:[#allocation11 + $0x78] sm:$0xff]
        %741 = vmatpush.msra.mxu0 %v740
        %742 = vmatpush.msra.mxu0 %v739
        %743 = vmatpush.msra.mxu0 %v738
        %744 = vmatpush.msra.mxu0 %v737
        %745 = vmatpush.msra.mxu0 %v736
        %746 = vmatpush.msra.mxu0 %v735
        %747 = vmatpush.msra.mxu0 %v734
        %748 = vmatpush.msra.mxu0 %v733
        %749 = vmatpush.msra.mxu0 %v732
        %750 = vmatpush.msra.mxu0 %v731
        %751 = vmatpush.msra.mxu0 %v730
        %752 = vmatpush.msra.mxu0 %v729
        %753 = vmatpush.msra.mxu0 %v728
        %754 = vmatpush.msra.mxu0 %v727
        %755 = vmatpush.msra.mxu0 %v726
        %756 = vmatpush.msra.mxu0 %v725
        %757 = vmatmul.f32.gmra.mxu0 %v721
        %v758 = vpop.f32.mrf.mxu0
        %v759 = vadd.f32 0.0, %v758
        %760 = vdwg.mxu0
        %v761 = vmul.f32 %v715, 0.9
        %v762 = vmul.f32 %v759, 0.1
        %v763 = vadd.f32 %v761, %v762
        %764 = vst [vmem:[#allocation1] sm:$0xff] %v413
        %s765 = scalar_lea.vmem [#allocation1], 6
        %v766 = vld [vmem:[%s765] ss:$9 sm:$0xff]
        %v768 = vadd.f32 %v763, %v766
        %v769 = vtanh.pop %v768
        %770 = vst [vmem:[#allocation1] sm:$0xff] %v414
        %s771 = scalar_lea.vmem [#allocation1], 6
        %v772 = vld [vmem:[%s771] ss:$9 sm:$0xff]
        %v774 = vadd.f32 %v769, %v772
        %s775 = sadd.s32 0, 6
        %s776 = scalar_lea.vmem %s395, %s775 [#allocation14]
        %777 = vst [vmem:[%s776] sm:$0x1] %v774
        %v778 = vld [vmem:[#allocation11] sm:$0xff]
        %v779 = vld [vmem:[#allocation11 + $0x8] sm:$0xff]
        %v780 = vld [vmem:[#allocation11 + $0x10] sm:$0xff]
        %v781 = vld [vmem:[#allocation11 + $0x18] sm:$0xff]
        %v782 = vld [vmem:[#allocation11 + $0x20] sm:$0xff]
        %v783 = vld [vmem:[#allocation11 + $0x28] sm:$0xff]
        %v784 = vld [vmem:[#allocation11 + $0x30] sm:$0xff]
        %v785 = vld [vmem:[#allocation11 + $0x38] sm:$0xff]
        %v786 = vld [vmem:[#allocation11 + $0x40] sm:$0xff]
        %v787 = vld [vmem:[#allocation11 + $0x48] sm:$0xff]
        %v788 = vld [vmem:[#allocation11 + $0x50] sm:$0xff]
        %v789 = vld [vmem:[#allocation11 + $0x58] sm:$0xff]
        %v790 = vld [vmem:[#allocation11 + $0x60] sm:$0xff]
        %v791 = vld [vmem:[#allocation11 + $0x68] sm:$0xff]
        %v792 = vld [vmem:[#allocation11 + $0x70] sm:$0xff]
        %v793 = vld [vmem:[#allocation11 + $0x78] sm:$0xff]
        %794 = vmatpush.msra.mxu0 %v793
        %795 = vmatpush.msra.mxu0 %v792
        %796 = vmatpush.msra.mxu0 %v791
        %797 = vmatpush.msra.mxu0 %v790
        %798 = vmatpush.msra.mxu0 %v789
        %799 = vmatpush.msra.mxu0 %v788
        %800 = vmatpush.msra.mxu0 %v787
        %801 = vmatpush.msra.mxu0 %v786
        %802 = vmatpush.msra.mxu0 %v785
        %803 = vmatpush.msra.mxu0 %v784
        %804 = vmatpush.msra.mxu0 %v783
        %805 = vmatpush.msra.mxu0 %v782
        %806 = vmatpush.msra.mxu0 %v781
        %807 = vmatpush.msra.mxu0 %v780
        %808 = vmatpush.msra.mxu0 %v779
        %809 = vmatpush.msra.mxu0 %v778
        %810 = vmatmul.f32.gmra.mxu0 %v774
        %v811 = vpop.f32.mrf.mxu0
        %v812 = vadd.f32 0.0, %v811
        %813 = vdwg.mxu0
        %v814 = vmul.f32 %v768, 0.9
        %v815 = vmul.f32 %v812, 0.1
        %v816 = vadd.f32 %v814, %v815
        %817 = vst [vmem:[#allocation1] sm:$0xff] %v413
        %s818 = scalar_lea.vmem [#allocation1], 7
        %v819 = vld [vmem:[%s818] ss:$9 sm:$0xff]
        %v821 = vadd.f32 %v816, %v819
        %v822 = vtanh.pop %v821
        %823 = vst [vmem:[#allocation1] sm:$0xff] %v414
        %s824 = scalar_lea.vmem [#allocation1], 7
        %v825 = vld [vmem:[%s824] ss:$9 sm:$0xff]
        %v827 = vadd.f32 %v822, %v825
        %s828 = sadd.s32 0, 7
        %s829 = scalar_lea.vmem %s395, %s828 [#allocation14]
        %830 = vst [vmem:[%s829] sm:$0x1] %v827
        %831 = vst [vmem:[#allocation2] sm:$0x1] %v821
        %832 = vst [vmem:[#allocation3] sm:$0x1] %v827
        %v833 = vld [vmem:[%s395] sm:$0xff]
        %v834 = vld [vmem:[#allocation12] sm:$0xff]
        %v835 = vld [vmem:[#allocation12 + $0x8] sm:$0xff]
        %v836 = vld [vmem:[#allocation12 + $0x10] sm:$0xff]
        %v837 = vld [vmem:[#allocation12 + $0x18] sm:$0xff]
        %v838 = vld [vmem:[#allocation12 + $0x20] sm:$0xff]
        %v839 = vld [vmem:[#allocation12 + $0x28] sm:$0xff]
        %v840 = vld [vmem:[#allocation12 + $0x30] sm:$0xff]
        %v841 = vld [vmem:[#allocation12 + $0x38] sm:$0xff]
        %v842 = vld [vmem:[#allocation12 + $0x40] sm:$0xff]
        %v843 = vld [vmem:[#allocation12 + $0x48] sm:$0xff]
        %v844 = vld [vmem:[#allocation12 + $0x50] sm:$0xff]
        %v845 = vld [vmem:[#allocation12 + $0x58] sm:$0xff]
        %v846 = vld [vmem:[#allocation12 + $0x60] sm:$0xff]
        %v847 = vld [vmem:[#allocation12 + $0x68] sm:$0xff]
        %v848 = vld [vmem:[#allocation12 + $0x70] sm:$0xff]
        %v849 = vld [vmem:[#allocation12 + $0x78] sm:$0xff]
        %850 = vmatpush.msra.mxu0 %v849
        %851 = vmatpush.msra.mxu0 %v848
        %852 = vmatpush.msra.mxu0 %v847
        %853 = vmatpush.msra.mxu0 %v846
        %854 = vmatpush.msra.mxu0 %v845
        %855 = vmatpush.msra.mxu0 %v844
        %856 = vmatpush.msra.mxu0 %v843
        %857 = vmatpush.msra.mxu0 %v842
        %858 = vmatpush.msra.mxu0 %v841
        %859 = vmatpush.msra.mxu0 %v840
        %860 = vmatpush.msra.mxu0 %v839
        %861 = vmatpush.msra.mxu0 %v838
        %862 = vmatpush.msra.mxu0 %v837
        %863 = vmatpush.msra.mxu0 %v836
        %864 = vmatpush.msra.mxu0 %v835
        %865 = vmatpush.msra.mxu0 %v834
        %866 = vmatmul.f32.gmra.mxu0 %v833
        %v867 = vpop.f32.mrf.mxu0
        %v868 = vadd.f32 0.0, %v867
        %869 = vdwg.mxu0
        %870 = vst [vmem:[%s402] sm:$0xff] %v868
        %s871 = sand.u32 %s172, 1
        %s872 = scalar_lea.sflag [#allocation6], %s871
        %s873 = sand.u32 %s172, 1
        %s874 = smul.addr %s873, 8
        %s875 = scalar_lea.vmem [#allocation14], %s874
        %s876 = sand.u32 %s198, 1
        %s877 = scalar_lea.sflag [#allocation16], %s876
        %s878 = sand.u32 %s198, 1
        %s879 = smul.addr %s878, 8
        %s880 = scalar_lea.vmem [#allocation15], %s879
        // Predicated region
        $region73: #{tpu_custom_call.1} parent=43 // pred_check
          %p881 = pneg %p182
        $region74: #{tpu_custom_call.1} parent=43 // pred_check_branch
          %883 = sbr.rel (%p881) target = $region76
        $region75: #{tpu_custom_call.1} parent=43 // pred_region
          %885 = vsyncadd %s872, 0
          %s886 = smul.addr %s28, 8
          %s887 = scalar_lea.hbm %s6, %s886
          %s889 = sshll.u32 %s875, 4
          %s890 = int_to_ptr.vmem [resolvable:$true] %s889
          %s891 = sshll.u32 %s887, 4
          %s892 = int_to_ptr.hbm [resolvable:$true] %s891
          %894 = dma.vmem_to_hbm [thread:$0]  %s890, 128, %s892, %s872
        $region76: #{tpu_custom_call.1} parent=43 // pred_fallthru
          _
        // Predicated region
        $region77: #{tpu_custom_call.1} parent=43 // pred_check
          %p895 = pneg %p208
        $region78: #{tpu_custom_call.1} parent=43 // pred_check_branch
          %897 = sbr.rel (%p895) target = $region80
        $region79: #{tpu_custom_call.1} parent=43 // pred_region
          %899 = vsyncadd %s877, 0
          %s900 = smul.addr %s28, 8
          %s901 = scalar_lea.hbm %s7, %s900
          %s903 = sshll.u32 %s880, 4
          %s904 = int_to_ptr.vmem [resolvable:$true] %s903
          %s905 = sshll.u32 %s901, 4
          %s906 = int_to_ptr.hbm [resolvable:$true] %s905
          %908 = dma.vmem_to_hbm [thread:$0]  %s904, 128, %s906, %s877
        $region80: #{tpu_custom_call.1} parent=43 // pred_fallthru
          _
      $region44: #{tpu_custom_call.1} parent=5 // pred_fallthru
        _
      %p909 = scmp.le.s32.totalorder 2, %s23
      // Predicated region
      $region81: #{tpu_custom_call.1} parent=5 // pred_check
        %p910 = pneg %p909
      $region82: #{tpu_custom_call.1} parent=5 // pred_check_branch
        %912 = sbr.rel (%p910) target = $region84
      $region83: #{tpu_custom_call.1} parent=5 // pred_region
        %s913 = ssub.s32 %s23, 2
        // Predicated region
        $region85: #{tpu_custom_call.1} parent=83 // pred_check
          %p914 = pneg %p188
        $region86: #{tpu_custom_call.1} parent=83 // pred_check_branch
          %916 = sbr.rel (%p914) target = $region88
        $region87: #{tpu_custom_call.1} parent=83 // pred_region
          %s917 = sand.u32 %s173, 1
          %s918 = scalar_lea.sflag [#allocation6], %s917
          %s919 = sand.u32 %s173, 1
          %s920 = smul.addr %s919, 8
          %s921 = scalar_lea.vmem [#allocation14], %s920
          %923 = dma.done %s918, 128
        $region88: #{tpu_custom_call.1} parent=83 // pred_fallthru
          _
        // Predicated region
        $region89: #{tpu_custom_call.1} parent=83 // pred_check
          %p924 = pneg %p214
        $region90: #{tpu_custom_call.1} parent=83 // pred_check_branch
          %926 = sbr.rel (%p924) target = $region92
        $region91: #{tpu_custom_call.1} parent=83 // pred_region
          %s927 = sand.u32 %s199, 1
          %s928 = scalar_lea.sflag [#allocation16], %s927
          %s929 = sand.u32 %s199, 1
          %s930 = smul.addr %s929, 8
          %s931 = scalar_lea.vmem [#allocation15], %s930
          %933 = dma.done %s928, 128
        $region92: #{tpu_custom_call.1} parent=83 // pred_fallthru
          _
      $region84: #{tpu_custom_call.1} parent=5 // pred_fallthru
        _
    $region6: #{tpu_custom_call.1} parent=1 // loop_footer
      %s27 = sadd.s32 1, %s23
    $region7: #{tpu_custom_call.1} parent=1 // loop_footer_branch
      %22 = sbr.rel target = $region3
    $region8: #{tpu_custom_call.1} parent=1 // loop_exit
      _
    %934 = vsyncpa [#allocation5], 1
    %s935 = scalar_lea.sflag [#allocation5], 1
    %936 = vsyncpa %s935, 1
    %937 = vsyncpa [#allocation8], 1
    %938 = vsyncpa [#allocation13], 1
    %939 = vsyncpa [#allocation6], 1
    %s940 = scalar_lea.sflag [#allocation6], 1
    %941 = vsyncpa %s940, 1
    %942 = vsyncpa [#allocation16], 1
    %s943 = scalar_lea.sflag [#allocation16], 1
    %944 = vsyncpa %s943, 1

</llo_original>
